<compile_context>
chip_gen: v7x
topology: tpu7x:2x2x1
jax: 0.10.0
libtpu: 0.0.40
codegen_flags: <defaults>
</compile_context>

<pallas_src>
import jax
import jax.numpy as jnp
from jax import lax
from jax.experimental import pallas as pl
from jax.experimental.pallas import tpu as pltpu


# ---------------------------------------------------------------------------
# Fused Pallas kernel (one grid step == one image)
# ---------------------------------------------------------------------------
def _sca_kernel(x_ref, wg_ref, wh1_ref, wh2_ref, ww1_ref, ww2_ref, out_ref):
    x = x_ref[...].astype(jnp.float32)              # (C, H, W) in VMEM
    C, H, W = x.shape

    # ---- global branch: mean/max over C -> 3x3 conv (2 -> 1) -> sigmoid ----
    def pad_hw(a):                                  # (H, W) -> (H+2, W+2), zeros
        zr = jnp.zeros((1, W), a.dtype)
        a = jnp.concatenate([zr, a, zr], axis=0)
        zc = jnp.zeros((H + 2, 1), a.dtype)
        return jnp.concatenate([zc, a, zc], axis=1)

    pooled_c = (pad_hw(jnp.mean(x, axis=0)), pad_hw(jnp.max(x, axis=0)))
    g = jnp.zeros((H, W), jnp.float32)
    for c in range(2):                              # 18 scalar MACs, weights in SMEM
        for dh in range(3):
            for dw in range(3):
                w_s = wg_ref[c * 9 + dh * 3 + dw]
                g = g + pooled_c[c][dh:dh + H, dw:dw + W] * w_s
    g = jax.nn.sigmoid(g)                           # (H, W)

    # ---- 1-D conv (k=3, pad=1, no bias) as one GEMM on stacked shifts ------
    def conv1d(a, w_flat):                          # a: (Cin, L), w_flat: (Cout, 3*Cin)
        Cin, L = a.shape
        z = jnp.zeros((Cin, 1), a.dtype)
        ap = jnp.concatenate([z, a, z], axis=1)                          # (Cin, L+2)
        stk = jnp.concatenate([ap[:, 0:L], ap[:, 1:1 + L], ap[:, 2:2 + L]],
                              axis=0)                                    # (3*Cin, L)
        return jnp.dot(w_flat, stk, preferred_element_type=jnp.float32)

    # ---- local_h: pool over W -> conv stack over length H ----
    lh_in = jnp.concatenate([jnp.mean(x, axis=2), jnp.max(x, axis=2)], axis=0)
    lh = jax.nn.sigmoid(
        conv1d(jnp.maximum(conv1d(lh_in, wh1_ref[...]), 0.0), wh2_ref[...]))  # (C, H)

    # ---- local_w: pool over H -> conv stack over length W ----
    lw_in = jnp.concatenate([jnp.mean(x, axis=1), jnp.max(x, axis=1)], axis=0)
    lw = jax.nn.sigmoid(
        conv1d(jnp.maximum(conv1d(lw_in, ww1_ref[...]), 0.0), ww2_ref[...]))  # (C, W)

    # ---- combine: out[c,h,w] = g[h,w] + lh[c,h] * lw[c,w] ----
    out = g[None, :, :] + lh[:, :, None] * lw[:, None, :]                # (C, H, W)
    out_ref[...] = out.astype(out_ref.dtype)


# ---------------------------------------------------------------------------
# Wrapper (weight re-layout is one-time glue, no heavy compute)
# ---------------------------------------------------------------------------
def spatial_coord_attention(x, params):
    N, C, H, W = x.shape

    def flat1d(w):                                  # (Cout, Cin, 3) -> (Cout, 3*Cin)
        co, ci, k = w.shape                         # columns ordered k*Cin + c
        return jnp.transpose(w, (0, 2, 1)).reshape(co, k * ci).astype(jnp.float32)

    wg = params["w_g"].reshape(-1).astype(jnp.float32)   # (18,), index c*9+dh*3+dw
    wh1, wh2 = flat1d(params["w_h1"]), flat1d(params["w_h2"])
    ww1, ww2 = flat1d(params["w_w1"]), flat1d(params["w_w2"])

    def resident2d(a):                              # whole weight, constant index_map
        return pl.BlockSpec(a.shape, lambda n: (0, 0))

    img_spec = pl.BlockSpec((None, C, H, W), lambda n: (n, 0, 0, 0))  # batch squeezed

    return pl.pallas_call(
        _sca_kernel,
        out_shape=jax.ShapeDtypeStruct((N, C, H, W), x.dtype),
        grid=(N,),
        in_specs=[
            img_spec,
            pl.BlockSpec(memory_space=pltpu.MemorySpace.SMEM),   # 18 conv2d weights
            resident2d(wh1), resident2d(wh2), resident2d(ww1), resident2d(ww2),
        ],
        out_specs=img_spec,
        compiler_params=pltpu.CompilerParams(
            dimension_semantics=("parallel",)),
    )(x, wg, wh1, wh2, ww1, ww2)


# ---------------------------------------------------------------------------
# Parameter init + pure-JAX reference
# ---------------------------------------------------------------------------
def init_params(key, c, reduction=16):
    mid = (2 * c) // reduction
    assert mid >= 1, "in_channels too small for this reduction"
    ks = jax.random.split(key, 5)

    def w(k, shape):
        fan_in = 1
        for d in shape[1:]:
            fan_in *= d
        return jax.random.normal(k, shape, jnp.float32) * (2.0 / fan_in) ** 0.5

    return {
        "w_g": w(ks[0], (1, 2, 3, 3)),              # Conv2d(2 -> 1, 3x3)
        "w_h1": w(ks[1], (mid, 2 * c, 3)),          # Conv1d(2C -> mid, 3)
        "w_h2": w(ks[2], (c, mid, 3)),              # Conv1d(mid -> C, 3)
        "w_w1": w(ks[3], (mid, 2 * c, 3)),
        "w_w2": w(ks[4], (c, mid, 3)),
    }


def spatial_coord_attention_ref(x, params):
    avg_c = jnp.mean(x, axis=1, keepdims=True)
    max_c = jnp.max(x, axis=1, keepdims=True)
    g = lax.conv_general_dilated(
        jnp.concatenate([avg_c, max_c], axis=1), params["w_g"],
        (1, 1), ((1, 1), (1, 1)),
        dimension_numbers=("NCHW", "OIHW", "NCHW"))
    g = jax.nn.sigmoid(g)                            # (N, 1, H, W)

    def conv1d(a, w):                                # a: (N, Cin, L), w: (Cout, Cin, 3)
        return lax.conv_general_dilated(
            a[..., None], w[..., None], (1, 1), ((1, 1), (0, 0)),
            dimension_numbers=("NCHW", "OIHW", "NCHW"))[..., 0]

    lh_in = jnp.concatenate([jnp.mean(x, axis=3), jnp.max(x, axis=3)], axis=1)
    lh = jax.nn.sigmoid(conv1d(
        jnp.maximum(conv1d(lh_in, params["w_h1"]), 0.0), params["w_h2"]))
    lw_in = jnp.concatenate([jnp.mean(x, axis=2), jnp.max(x, axis=2)], axis=1)
    lw = jax.nn.sigmoid(conv1d(
        jnp.maximum(conv1d(lw_in, params["w_w1"]), 0.0), params["w_w2"]))
    return g + lh[:, :, :, None] * lw[:, :, None, :]


if __name__ == "__main__":
    key = jax.random.PRNGKey(0)
    k_p, k_x = jax.random.split(key, 2)
    N, C, H, W = 2, 16, 16, 16                       # 2C // reduction = 2
    params = init_params(k_p, C, reduction=16)
    x = jax.random.normal(k_x, (N, C, H, W), jnp.float32)

    out = jax.jit(spatial_coord_attention)(x, params)
    out = jax.block_until_ready(out)
    ref = spatial_coord_attention_ref(x, params)

    assert out.shape == (N, C, H, W), out.shape
    err = float(jnp.max(jnp.abs(out - ref)))
    assert jnp.allclose(out, ref, atol=1e-3, rtol=1e-3), err
    print("KERNEL_OK")
</pallas_src>

<mosaic_0001>
module attributes {stable_mosaic.version = 11 : i64} {
  func.func @_sca_kernel(%arg0: i32, %arg1: memref<1x16x16x16xf32, #tpu.memory_space<vmem>>, %arg2: memref<18xf32, #tpu.memory_space<smem>>, %arg3: memref<2x96xf32, #tpu.memory_space<vmem>>, %arg4: memref<16x6xf32, #tpu.memory_space<vmem>>, %arg5: memref<2x96xf32, #tpu.memory_space<vmem>>, %arg6: memref<16x6xf32, #tpu.memory_space<vmem>>, %arg7: memref<1x16x16x16xf32, #tpu.memory_space<vmem>>) attributes {dimension_semantics = [#tpu.dimension_semantics<parallel>], iteration_bounds = array<i64: 2>, scalar_prefetch = 0 : i64, scratch_operands = 0 : i64, tpu.core_type = #tpu.core_type<tc>, window_params = [{transform_indices = @transform_0, window_bounds = array<i64: 1, 16, 16, 16>}, {transform_indices = @transform_1, window_bounds = array<i64: 18>}, {pipeline_mode = #tpu.pipeline_mode<synchronous>, transform_indices = @transform_2, window_bounds = array<i64: 2, 96>}, {pipeline_mode = #tpu.pipeline_mode<synchronous>, transform_indices = @transform_3, window_bounds = array<i64: 16, 6>}, {pipeline_mode = #tpu.pipeline_mode<synchronous>, transform_indices = @transform_4, window_bounds = array<i64: 2, 96>}, {pipeline_mode = #tpu.pipeline_mode<synchronous>, transform_indices = @transform_5, window_bounds = array<i64: 16, 6>}, {transform_indices = @transform_6, window_bounds = array<i64: 1, 16, 16, 16>}]} {
    %c0 = arith.constant 0 : index
    %c0_0 = arith.constant 0 : index
    %c0_1 = arith.constant 0 : index
    %c0_2 = arith.constant 0 : index
    %0 = vector.load %arg1[%c0, %c0_0, %c0_1, %c0_2] : memref<1x16x16x16xf32, #tpu.memory_space<vmem>>, vector<1x16x16x16xf32>
    %1 = vector.shape_cast %0 : vector<1x16x16x16xf32> to vector<16x16x16xf32>
    %cst = arith.constant dense<0.000000e+00> : vector<16x16xf32>
    %2 = vector.multi_reduction <add>, %1, %cst [0] : vector<16x16x16xf32> to vector<16x16xf32>
    %cst_3 = arith.constant 1.600000e+01 : f32
    %3 = vector.broadcast %cst_3 : f32 to vector<16x16xf32>
    %4 = arith.divf %2, %3 : vector<16x16xf32>
    %cst_4 = arith.constant 0.000000e+00 : f32
    %5 = vector.broadcast %cst_4 : f32 to vector<1x16xf32>
    %6 = tpu.concatenate %5, %4, %5 in 0 : vector<1x16xf32>, vector<16x16xf32>, vector<1x16xf32> -> vector<18x16xf32>
    %cst_5 = arith.constant 0.000000e+00 : f32
    %7 = vector.broadcast %cst_5 : f32 to vector<18x1xf32>
    %8 = tpu.concatenate %7, %6, %7 in 1 : vector<18x1xf32>, vector<18x16xf32>, vector<18x1xf32> -> vector<18x18xf32>
    %cst_6 = arith.constant dense<0xFF800000> : vector<16x16xf32>
    %9 = vector.multi_reduction <maximumf>, %1, %cst_6 [0] : vector<16x16x16xf32> to vector<16x16xf32>
    %cst_7 = arith.constant 0.000000e+00 : f32
    %10 = vector.broadcast %cst_7 : f32 to vector<1x16xf32>
    %11 = tpu.concatenate %10, %9, %10 in 0 : vector<1x16xf32>, vector<16x16xf32>, vector<1x16xf32> -> vector<18x16xf32>
    %cst_8 = arith.constant 0.000000e+00 : f32
    %12 = vector.broadcast %cst_8 : f32 to vector<18x1xf32>
    %13 = tpu.concatenate %12, %11, %12 in 1 : vector<18x1xf32>, vector<18x16xf32>, vector<18x1xf32> -> vector<18x18xf32>
    %cst_9 = arith.constant 0.000000e+00 : f32
    %14 = vector.broadcast %cst_9 : f32 to vector<16x16xf32>
    %c0_10 = arith.constant 0 : index
    %15 = memref.load %arg2[%c0_10] : memref<18xf32, #tpu.memory_space<smem>>
    %16 = vector.extract_strided_slice %8 {offsets = [0, 0], sizes = [16, 16], strides = [1, 1]} : vector<18x18xf32> to vector<16x16xf32>
    %17 = vector.broadcast %15 : f32 to vector<16x16xf32>
    %18 = arith.mulf %16, %17 : vector<16x16xf32>
    %19 = arith.addf %14, %18 : vector<16x16xf32>
    %c1 = arith.constant 1 : index
    %20 = memref.load %arg2[%c1] : memref<18xf32, #tpu.memory_space<smem>>
    %21 = vector.extract_strided_slice %8 {offsets = [0, 1], sizes = [16, 16], strides = [1, 1]} : vector<18x18xf32> to vector<16x16xf32>
    %22 = vector.broadcast %20 : f32 to vector<16x16xf32>
    %23 = arith.mulf %21, %22 : vector<16x16xf32>
    %24 = arith.addf %19, %23 : vector<16x16xf32>
    %c2 = arith.constant 2 : index
    %25 = memref.load %arg2[%c2] : memref<18xf32, #tpu.memory_space<smem>>
    %26 = vector.extract_strided_slice %8 {offsets = [0, 2], sizes = [16, 16], strides = [1, 1]} : vector<18x18xf32> to vector<16x16xf32>
    %27 = vector.broadcast %25 : f32 to vector<16x16xf32>
    %28 = arith.mulf %26, %27 : vector<16x16xf32>
    %29 = arith.addf %24, %28 : vector<16x16xf32>
    %c3 = arith.constant 3 : index
    %30 = memref.load %arg2[%c3] : memref<18xf32, #tpu.memory_space<smem>>
    %31 = vector.extract_strided_slice %8 {offsets = [1, 0], sizes = [16, 16], strides = [1, 1]} : vector<18x18xf32> to vector<16x16xf32>
    %32 = vector.broadcast %30 : f32 to vector<16x16xf32>
    %33 = arith.mulf %31, %32 : vector<16x16xf32>
    %34 = arith.addf %29, %33 : vector<16x16xf32>
    %c4 = arith.constant 4 : index
    %35 = memref.load %arg2[%c4] : memref<18xf32, #tpu.memory_space<smem>>
    %36 = vector.extract_strided_slice %8 {offsets = [1, 1], sizes = [16, 16], strides = [1, 1]} : vector<18x18xf32> to vector<16x16xf32>
    %37 = vector.broadcast %35 : f32 to vector<16x16xf32>
    %38 = arith.mulf %36, %37 : vector<16x16xf32>
    %39 = arith.addf %34, %38 : vector<16x16xf32>
    %c5 = arith.constant 5 : index
    %40 = memref.load %arg2[%c5] : memref<18xf32, #tpu.memory_space<smem>>
    %41 = vector.extract_strided_slice %8 {offsets = [1, 2], sizes = [16, 16], strides = [1, 1]} : vector<18x18xf32> to vector<16x16xf32>
    %42 = vector.broadcast %40 : f32 to vector<16x16xf32>
    %43 = arith.mulf %41, %42 : vector<16x16xf32>
    %44 = arith.addf %39, %43 : vector<16x16xf32>
    %c6 = arith.constant 6 : index
    %45 = memref.load %arg2[%c6] : memref<18xf32, #tpu.memory_space<smem>>
    %46 = vector.extract_strided_slice %8 {offsets = [2, 0], sizes = [16, 16], strides = [1, 1]} : vector<18x18xf32> to vector<16x16xf32>
    %47 = vector.broadcast %45 : f32 to vector<16x16xf32>
    %48 = arith.mulf %46, %47 : vector<16x16xf32>
    %49 = arith.addf %44, %48 : vector<16x16xf32>
    %c7 = arith.constant 7 : index
    %50 = memref.load %arg2[%c7] : memref<18xf32, #tpu.memory_space<smem>>
    %51 = vector.extract_strided_slice %8 {offsets = [2, 1], sizes = [16, 16], strides = [1, 1]} : vector<18x18xf32> to vector<16x16xf32>
    %52 = vector.broadcast %50 : f32 to vector<16x16xf32>
    %53 = arith.mulf %51, %52 : vector<16x16xf32>
    %54 = arith.addf %49, %53 : vector<16x16xf32>
    %c8 = arith.constant 8 : index
    %55 = memref.load %arg2[%c8] : memref<18xf32, #tpu.memory_space<smem>>
    %56 = vector.extract_strided_slice %8 {offsets = [2, 2], sizes = [16, 16], strides = [1, 1]} : vector<18x18xf32> to vector<16x16xf32>
    %57 = vector.broadcast %55 : f32 to vector<16x16xf32>
    %58 = arith.mulf %56, %57 : vector<16x16xf32>
    %59 = arith.addf %54, %58 : vector<16x16xf32>
    %c9 = arith.constant 9 : index
    %60 = memref.load %arg2[%c9] : memref<18xf32, #tpu.memory_space<smem>>
    %61 = vector.extract_strided_slice %13 {offsets = [0, 0], sizes = [16, 16], strides = [1, 1]} : vector<18x18xf32> to vector<16x16xf32>
    %62 = vector.broadcast %60 : f32 to vector<16x16xf32>
    %63 = arith.mulf %61, %62 : vector<16x16xf32>
    %64 = arith.addf %59, %63 : vector<16x16xf32>
    %c10 = arith.constant 10 : index
    %65 = memref.load %arg2[%c10] : memref<18xf32, #tpu.memory_space<smem>>
    %66 = vector.extract_strided_slice %13 {offsets = [0, 1], sizes = [16, 16], strides = [1, 1]} : vector<18x18xf32> to vector<16x16xf32>
    %67 = vector.broadcast %65 : f32 to vector<16x16xf32>
    %68 = arith.mulf %66, %67 : vector<16x16xf32>
    %69 = arith.addf %64, %68 : vector<16x16xf32>
    %c11 = arith.constant 11 : index
    %70 = memref.load %arg2[%c11] : memref<18xf32, #tpu.memory_space<smem>>
    %71 = vector.extract_strided_slice %13 {offsets = [0, 2], sizes = [16, 16], strides = [1, 1]} : vector<18x18xf32> to vector<16x16xf32>
    %72 = vector.broadcast %70 : f32 to vector<16x16xf32>
    %73 = arith.mulf %71, %72 : vector<16x16xf32>
    %74 = arith.addf %69, %73 : vector<16x16xf32>
    %c12 = arith.constant 12 : index
    %75 = memref.load %arg2[%c12] : memref<18xf32, #tpu.memory_space<smem>>
    %76 = vector.extract_strided_slice %13 {offsets = [1, 0], sizes = [16, 16], strides = [1, 1]} : vector<18x18xf32> to vector<16x16xf32>
    %77 = vector.broadcast %75 : f32 to vector<16x16xf32>
    %78 = arith.mulf %76, %77 : vector<16x16xf32>
    %79 = arith.addf %74, %78 : vector<16x16xf32>
    %c13 = arith.constant 13 : index
    %80 = memref.load %arg2[%c13] : memref<18xf32, #tpu.memory_space<smem>>
    %81 = vector.extract_strided_slice %13 {offsets = [1, 1], sizes = [16, 16], strides = [1, 1]} : vector<18x18xf32> to vector<16x16xf32>
    %82 = vector.broadcast %80 : f32 to vector<16x16xf32>
    %83 = arith.mulf %81, %82 : vector<16x16xf32>
    %84 = arith.addf %79, %83 : vector<16x16xf32>
    %c14 = arith.constant 14 : index
    %85 = memref.load %arg2[%c14] : memref<18xf32, #tpu.memory_space<smem>>
    %86 = vector.extract_strided_slice %13 {offsets = [1, 2], sizes = [16, 16], strides = [1, 1]} : vector<18x18xf32> to vector<16x16xf32>
    %87 = vector.broadcast %85 : f32 to vector<16x16xf32>
    %88 = arith.mulf %86, %87 : vector<16x16xf32>
    %89 = arith.addf %84, %88 : vector<16x16xf32>
    %c15 = arith.constant 15 : index
    %90 = memref.load %arg2[%c15] : memref<18xf32, #tpu.memory_space<smem>>
    %91 = vector.extract_strided_slice %13 {offsets = [2, 0], sizes = [16, 16], strides = [1, 1]} : vector<18x18xf32> to vector<16x16xf32>
    %92 = vector.broadcast %90 : f32 to vector<16x16xf32>
    %93 = arith.mulf %91, %92 : vector<16x16xf32>
    %94 = arith.addf %89, %93 : vector<16x16xf32>
    %c16 = arith.constant 16 : index
    %95 = memref.load %arg2[%c16] : memref<18xf32, #tpu.memory_space<smem>>
    %96 = vector.extract_strided_slice %13 {offsets = [2, 1], sizes = [16, 16], strides = [1, 1]} : vector<18x18xf32> to vector<16x16xf32>
    %97 = vector.broadcast %95 : f32 to vector<16x16xf32>
    %98 = arith.mulf %96, %97 : vector<16x16xf32>
    %99 = arith.addf %94, %98 : vector<16x16xf32>
    %c17 = arith.constant 17 : index
    %100 = memref.load %arg2[%c17] : memref<18xf32, #tpu.memory_space<smem>>
    %101 = vector.extract_strided_slice %13 {offsets = [2, 2], sizes = [16, 16], strides = [1, 1]} : vector<18x18xf32> to vector<16x16xf32>
    %102 = vector.broadcast %100 : f32 to vector<16x16xf32>
    %103 = arith.mulf %101, %102 : vector<16x16xf32>
    %104 = arith.addf %99, %103 : vector<16x16xf32>
    %105 = arith.negf %104 : vector<16x16xf32>
    %106 = math.exp %105 : vector<16x16xf32>
    %cst_11 = arith.constant 1.000000e+00 : f32
    %107 = vector.broadcast %cst_11 : f32 to vector<16x16xf32>
    %108 = arith.addf %107, %106 : vector<16x16xf32>
    %109 = arith.divf %107, %108 : vector<16x16xf32>
    %cst_12 = arith.constant dense<0.000000e+00> : vector<16x16xf32>
    %110 = vector.multi_reduction <add>, %1, %cst_12 [2] : vector<16x16x16xf32> to vector<16x16xf32>
    %cst_13 = arith.constant 1.600000e+01 : f32
    %111 = vector.broadcast %cst_13 : f32 to vector<16x16xf32>
    %112 = arith.divf %110, %111 : vector<16x16xf32>
    %cst_14 = arith.constant dense<0xFF800000> : vector<16x16xf32>
    %113 = vector.multi_reduction <maximumf>, %1, %cst_14 [2] : vector<16x16x16xf32> to vector<16x16xf32>
    %114 = tpu.concatenate %112, %113 in 0 : vector<16x16xf32>, vector<16x16xf32> -> vector<32x16xf32>
    %c0_15 = arith.constant 0 : index
    %c0_16 = arith.constant 0 : index
    %115 = vector.load %arg3[%c0_15, %c0_16] : memref<2x96xf32, #tpu.memory_space<vmem>>, vector<2x96xf32>
    %cst_17 = arith.constant 0.000000e+00 : f32
    %116 = vector.broadcast %cst_17 : f32 to vector<32x1xf32>
    %117 = tpu.concatenate %116, %114, %116 in 1 : vector<32x1xf32>, vector<32x16xf32>, vector<32x1xf32> -> vector<32x18xf32>
    %118 = vector.extract_strided_slice %117 {offsets = [0, 0], sizes = [32, 16], strides = [1, 1]} : vector<32x18xf32> to vector<32x16xf32>
    %119 = vector.extract_strided_slice %117 {offsets = [0, 1], sizes = [32, 16], strides = [1, 1]} : vector<32x18xf32> to vector<32x16xf32>
    %120 = vector.extract_strided_slice %117 {offsets = [0, 2], sizes = [32, 16], strides = [1, 1]} : vector<32x18xf32> to vector<32x16xf32>
    %121 = tpu.concatenate %118, %119, %120 in 0 : vector<32x16xf32>, vector<32x16xf32>, vector<32x16xf32> -> vector<96x16xf32>
    %cst_18 = arith.constant dense<0.000000e+00> : vector<2x16xf32>
    %122 = tpu.matmul %115, %121, %cst_18 {dimension_numbers = #tpu.dot_dimension_numbers<[1], [0], [0], [1], [0, 0, 1, 1], [], []>} : vector<2x96xf32>, vector<96x16xf32>, vector<2x16xf32> -> vector<2x16xf32>
    %cst_19 = arith.constant 0.000000e+00 : f32
    %123 = vector.broadcast %cst_19 : f32 to vector<2x16xf32>
    %124 = arith.maximumf %122, %123 : vector<2x16xf32>
    %c0_20 = arith.constant 0 : index
    %c0_21 = arith.constant 0 : index
    %125 = vector.load %arg4[%c0_20, %c0_21] : memref<16x6xf32, #tpu.memory_space<vmem>>, vector<16x6xf32>
    %cst_22 = arith.constant 0.000000e+00 : f32
    %126 = vector.broadcast %cst_22 : f32 to vector<2x1xf32>
    %127 = tpu.concatenate %126, %124, %126 in 1 : vector<2x1xf32>, vector<2x16xf32>, vector<2x1xf32> -> vector<2x18xf32>
    %128 = vector.extract_strided_slice %127 {offsets = [0, 0], sizes = [2, 16], strides = [1, 1]} : vector<2x18xf32> to vector<2x16xf32>
    %129 = vector.extract_strided_slice %127 {offsets = [0, 1], sizes = [2, 16], strides = [1, 1]} : vector<2x18xf32> to vector<2x16xf32>
    %130 = vector.extract_strided_slice %127 {offsets = [0, 2], sizes = [2, 16], strides = [1, 1]} : vector<2x18xf32> to vector<2x16xf32>
    %131 = tpu.concatenate %128, %129, %130 in 0 : vector<2x16xf32>, vector<2x16xf32>, vector<2x16xf32> -> vector<6x16xf32>
    %cst_23 = arith.constant dense<0.000000e+00> : vector<16x16xf32>
    %132 = tpu.matmul %125, %131, %cst_23 {dimension_numbers = #tpu.dot_dimension_numbers<[1], [0], [0], [1], [0, 0, 1, 1], [], []>} : vector<16x6xf32>, vector<6x16xf32>, vector<16x16xf32> -> vector<16x16xf32>
    %133 = arith.negf %132 : vector<16x16xf32>
    %134 = math.exp %133 : vector<16x16xf32>
    %cst_24 = arith.constant 1.000000e+00 : f32
    %135 = vector.broadcast %cst_24 : f32 to vector<16x16xf32>
    %136 = arith.addf %135, %134 : vector<16x16xf32>
    %137 = arith.divf %135, %136 : vector<16x16xf32>
    %cst_25 = arith.constant dense<0.000000e+00> : vector<16x16xf32>
    %138 = vector.multi_reduction <add>, %1, %cst_25 [1] : vector<16x16x16xf32> to vector<16x16xf32>
    %cst_26 = arith.constant 1.600000e+01 : f32
    %139 = vector.broadcast %cst_26 : f32 to vector<16x16xf32>
    %140 = arith.divf %138, %139 : vector<16x16xf32>
    %cst_27 = arith.constant dense<0xFF800000> : vector<16x16xf32>
    %141 = vector.multi_reduction <maximumf>, %1, %cst_27 [1] : vector<16x16x16xf32> to vector<16x16xf32>
    %142 = tpu.concatenate %140, %141 in 0 : vector<16x16xf32>, vector<16x16xf32> -> vector<32x16xf32>
    %c0_28 = arith.constant 0 : index
    %c0_29 = arith.constant 0 : index
    %143 = vector.load %arg5[%c0_28, %c0_29] : memref<2x96xf32, #tpu.memory_space<vmem>>, vector<2x96xf32>
    %cst_30 = arith.constant 0.000000e+00 : f32
    %144 = vector.broadcast %cst_30 : f32 to vector<32x1xf32>
    %145 = tpu.concatenate %144, %142, %144 in 1 : vector<32x1xf32>, vector<32x16xf32>, vector<32x1xf32> -> vector<32x18xf32>
    %146 = vector.extract_strided_slice %145 {offsets = [0, 0], sizes = [32, 16], strides = [1, 1]} : vector<32x18xf32> to vector<32x16xf32>
    %147 = vector.extract_strided_slice %145 {offsets = [0, 1], sizes = [32, 16], strides = [1, 1]} : vector<32x18xf32> to vector<32x16xf32>
    %148 = vector.extract_strided_slice %145 {offsets = [0, 2], sizes = [32, 16], strides = [1, 1]} : vector<32x18xf32> to vector<32x16xf32>
    %149 = tpu.concatenate %146, %147, %148 in 0 : vector<32x16xf32>, vector<32x16xf32>, vector<32x16xf32> -> vector<96x16xf32>
    %cst_31 = arith.constant dense<0.000000e+00> : vector<2x16xf32>
    %150 = tpu.matmul %143, %149, %cst_31 {dimension_numbers = #tpu.dot_dimension_numbers<[1], [0], [0], [1], [0, 0, 1, 1], [], []>} : vector<2x96xf32>, vector<96x16xf32>, vector<2x16xf32> -> vector<2x16xf32>
    %cst_32 = arith.constant 0.000000e+00 : f32
    %151 = vector.broadcast %cst_32 : f32 to vector<2x16xf32>
    %152 = arith.maximumf %150, %151 : vector<2x16xf32>
    %c0_33 = arith.constant 0 : index
    %c0_34 = arith.constant 0 : index
    %153 = vector.load %arg6[%c0_33, %c0_34] : memref<16x6xf32, #tpu.memory_space<vmem>>, vector<16x6xf32>
    %cst_35 = arith.constant 0.000000e+00 : f32
    %154 = vector.broadcast %cst_35 : f32 to vector<2x1xf32>
    %155 = tpu.concatenate %154, %152, %154 in 1 : vector<2x1xf32>, vector<2x16xf32>, vector<2x1xf32> -> vector<2x18xf32>
    %156 = vector.extract_strided_slice %155 {offsets = [0, 0], sizes = [2, 16], strides = [1, 1]} : vector<2x18xf32> to vector<2x16xf32>
    %157 = vector.extract_strided_slice %155 {offsets = [0, 1], sizes = [2, 16], strides = [1, 1]} : vector<2x18xf32> to vector<2x16xf32>
    %158 = vector.extract_strided_slice %155 {offsets = [0, 2], sizes = [2, 16], strides = [1, 1]} : vector<2x18xf32> to vector<2x16xf32>
    %159 = tpu.concatenate %156, %157, %158 in 0 : vector<2x16xf32>, vector<2x16xf32>, vector<2x16xf32> -> vector<6x16xf32>
    %cst_36 = arith.constant dense<0.000000e+00> : vector<16x16xf32>
    %160 = tpu.matmul %153, %159, %cst_36 {dimension_numbers = #tpu.dot_dimension_numbers<[1], [0], [0], [1], [0, 0, 1, 1], [], []>} : vector<16x6xf32>, vector<6x16xf32>, vector<16x16xf32> -> vector<16x16xf32>
    %161 = arith.negf %160 : vector<16x16xf32>
    %162 = math.exp %161 : vector<16x16xf32>
    %cst_37 = arith.constant 1.000000e+00 : f32
    %163 = vector.broadcast %cst_37 : f32 to vector<16x16xf32>
    %164 = arith.addf %163, %162 : vector<16x16xf32>
    %165 = arith.divf %163, %164 : vector<16x16xf32>
    %166 = vector.shape_cast %109 : vector<16x16xf32> to vector<1x16x16xf32>
    %167 = vector.shape_cast %137 : vector<16x16xf32> to vector<16x16x1xf32>
    %168 = vector.shape_cast %165 : vector<16x16xf32> to vector<16x1x16xf32>
    %169 = vector.broadcast %167 : vector<16x16x1xf32> to vector<16x16x16xf32>
    %170 = vector.broadcast %168 : vector<16x1x16xf32> to vector<16x16x16xf32>
    %171 = arith.mulf %169, %170 : vector<16x16x16xf32>
    %172 = vector.broadcast %166 : vector<1x16x16xf32> to vector<16x16x16xf32>
    %173 = arith.addf %172, %171 : vector<16x16x16xf32>
    %c0_38 = arith.constant 0 : index
    %c0_39 = arith.constant 0 : index
    %c0_40 = arith.constant 0 : index
    %c0_41 = arith.constant 0 : index
    %174 = vector.load %arg7[%c0_38, %c0_39, %c0_40, %c0_41] : memref<1x16x16x16xf32, #tpu.memory_space<vmem>>, vector<1x16x16x16xf32>
    %175 = vector.shape_cast %174 : vector<1x16x16x16xf32> to vector<16x16x16xf32>
    %176 = vector.shape_cast %173 : vector<16x16x16xf32> to vector<1x16x16x16xf32>
    tpu.vector_store %arg7[%c0_38, %c0_39, %c0_40, %c0_41], %176 {strides = array<i32>} : memref<1x16x16x16xf32, #tpu.memory_space<vmem>>, vector<1x16x16x16xf32>,
    return
  }
  func.func @transform_0(%arg0: i32) -> (i32, i32, i32, i32) {
    %c0_i32 = arith.constant 0 : i32
    %c0_i32_0 = arith.constant 0 : i32
    %c0_i32_1 = arith.constant 0 : i32
    %c0_i32_2 = arith.constant 0 : i32
    return %arg0, %c0_i32, %c0_i32_0, %c0_i32_1 : i32, i32, i32, i32
  }
  func.func @transform_1(%arg0: i32) -> i32 {
    %c0_i32 = arith.constant 0 : i32
    %c0_i32_0 = arith.constant 0 : i32
    return %c0_i32 : i32
  }
  func.func @transform_2(%arg0: i32) -> (i32, i32) {
    %c0_i32 = arith.constant 0 : i32
    %c0_i32_0 = arith.constant 0 : i32
    %c0_i32_1 = arith.constant 0 : i32
    return %c0_i32, %c0_i32_0 : i32, i32
  }
  func.func @transform_3(%arg0: i32) -> (i32, i32) {
    %c0_i32 = arith.constant 0 : i32
    %c0_i32_0 = arith.constant 0 : i32
    %c0_i32_1 = arith.constant 0 : i32
    return %c0_i32, %c0_i32_0 : i32, i32
  }
  func.func @transform_4(%arg0: i32) -> (i32, i32) {
    %c0_i32 = arith.constant 0 : i32
    %c0_i32_0 = arith.constant 0 : i32
    %c0_i32_1 = arith.constant 0 : i32
    return %c0_i32, %c0_i32_0 : i32, i32
  }
  func.func @transform_5(%arg0: i32) -> (i32, i32) {
    %c0_i32 = arith.constant 0 : i32
    %c0_i32_0 = arith.constant 0 : i32
    %c0_i32_1 = arith.constant 0 : i32
    return %c0_i32, %c0_i32_0 : i32, i32
  }
  func.func @transform_6(%arg0: i32) -> (i32, i32, i32, i32) {
    %c0_i32 = arith.constant 0 : i32
    %c0_i32_0 = arith.constant 0 : i32
    %c0_i32_1 = arith.constant 0 : i32
    %c0_i32_2 = arith.constant 0 : i32
    return %arg0, %c0_i32, %c0_i32_0, %c0_i32_1 : i32, i32, i32, i32
  }
}

</mosaic_0001>

<llo_original>
// kernel: spatial_coord_attention.1
$region0: #{spatial_coord_attention.1}
  #allocation0 [shape = 'u32[]', space=smem, size = 0x4, offset = 0x4, fixed_abs, tag = 'smem constant byte address 0x4 - core index']
  #allocation1 [shape = 'u32[144,128]{1,0:T(1,128)}', space=vmem, size = 0x12000, scoped, tag = 'internal scratch']
  %s0 = inlined_call_operand.hbm [shape: f32[2,16,16,16], index: 0, kind: input, shape index: {}]
  %s1 = inlined_call_operand.vmem [shape: f32[18], index: 1, kind: input, shape index: {}]
  %s2 = inlined_call_operand.vmem [shape: f32[2,96], index: 2, kind: input, shape index: {}]
  %s3 = inlined_call_operand.vmem [shape: f32[16,6], index: 3, kind: input, shape index: {}]
  %s4 = inlined_call_operand.vmem [shape: f32[2,96], index: 4, kind: input, shape index: {}]
  %s5 = inlined_call_operand.vmem [shape: f32[16,6], index: 5, kind: input, shape index: {}]
  %s6 = inlined_call_operand.hbm [shape: f32[2,16,16,16], index: 6, kind: output, shape index: {}]
  %s7 = sld [smem:[#allocation0]]
  $region65: #{spatial_coord_attention.1} parent=0
    _
  %s9 = ssub.s32 1, %s7
  %s10 = scalar_select 0, %s9, %s7
  $region1: #{spatial_coord_attention.1} parent=0
    #allocation2 [shape = 'u8[262144]{0}', space=vmem, size = 0x40000, scoped, tag = 'input window, operand 0']
    #allocation3 [shape = 's32[2]{0}', space=sflag, size = 0x8, scoped, tag = 'scoped memory for spatial_coord_attention.1']
    #allocation4 [shape = 's32[2]{0}', space=sflag, size = 0x8, scoped, tag = 'scoped memory for spatial_coord_attention.1']
    #allocation5 [shape = 's32[2]{0}', space=sflag, size = 0x8, scoped, tag = 'scoped memory for spatial_coord_attention.1']
    #allocation6 [shape = 'u8[512]{0}', space=smem, size = 0x200, scoped, tag = 'input window, operand 1, single buffered']
    #allocation7 [shape = 'u8[262144]{0}', space=vmem, size = 0x40000, scoped, tag = 'output window, operand 0']
    %11 = vsyncpa [#allocation3], 0
    %s12 = scalar_lea.sflag [#allocation3], 1
    %13 = vsyncpa %s12, 0
    %14 = vsyncpa [#allocation5], 0
    %15 = vsyncpa [#allocation4], 0
    %s16 = scalar_lea.sflag [#allocation4], 1
    %17 = vsyncpa %s16, 0
    loop: start=0, step=1, limit=4
    $region2: #{spatial_coord_attention.1} parent=1 // loop_pre_header
      _
    $region3: #{spatial_coord_attention.1} parent=1 // loop_header
      %s19 = sphi 0, %s23
      %p20 = scmp.ge.s32.totalorder %s19, 4
      %s29 = sphi 0, %s31
      %s32 = sphi 0, %s29
      %s33 = sphi 0, %s32
      %s49 = sphi 0, %s33
      %s53 = sphi 0, %s53
      %s55 = sphi 0, %s53
      %s56 = sphi 0, %s55
      %s70 = sphi 0, %s56
      %s74 = sphi 0, %s74
      %s76 = sphi 0, %s74
      %s77 = sphi 0, %s76
      %s91 = sphi 0, %s77
      %s95 = sphi 0, %s95
      %s97 = sphi 0, %s95
      %s98 = sphi 0, %s97
      %s112 = sphi 0, %s98
      %s116 = sphi 0, %s116
      %s118 = sphi 0, %s116
      %s119 = sphi 0, %s118
      %s133 = sphi 0, %s119
      %s137 = sphi 0, %s137
      %s139 = sphi 0, %s137
      %s140 = sphi 0, %s139
      %s154 = sphi 0, %s140
      %s160 = sphi 0, %s162
      %s163 = sphi 0, %s160
      %s164 = sphi 0, %s163
      %s180 = sphi 0, %s164
    $region4: #{spatial_coord_attention.1} parent=1 // loop_header_branch
      %22 = sbr.rel (%p20) target = $region8
    $region5: #{spatial_coord_attention.1} parent=1 // loop_body
      %s24 = ssub.s32 %s19, 1
      %s25 = ssub.s32 %s19, 2
      %s26 = sadd.s32 %s19, 1
      %s27 = ssub.s32 %s19, %s26
      %p28 = scmp.eq.s32.totalorder %s27, 0
      %s30 = sadd.s32 %s29, 1
      %s31 = scalar_select %p28, %s29, %s30
      %p34 = pneg %p28
      %p35 = scmp.eq.s32.totalorder %s19, 1
      %p36 = por %p34, %p35
      %p37 = scmp.ne.s32.totalorder %s29, %s32
      %p38 = scmp.eq.s32.totalorder %s19, 0
      %p39 = por %p37, %p38
      %p40 = scmp.ne.s32.totalorder %s29, %s32
      %p41 = scmp.eq.s32.totalorder %s24, 1
      %p42 = por %p40, %p41
      %p43 = scmp.ne.s32.totalorder %s32, %s33
      %p44 = scmp.eq.s32.totalorder %s24, 0
      %p45 = por %p43, %p44
      %p46 = scmp.ne.s32.totalorder %s32, %s33
      %p47 = scmp.eq.s32.totalorder %s25, 1
      %p48 = por %p46, %p47
      %p50 = scmp.ne.s32.totalorder %s33, %s49
      %p51 = scmp.eq.s32.totalorder %s25, 0
      %p52 = por %p50, %p51
      %s54 = sadd.s32 %s53, 1
      %p57 = scmp.eq.s32.totalorder %s19, 1
      %p58 = scmp.ne.s32.totalorder %s53, %s55
      %p59 = scmp.eq.s32.totalorder %s19, 0
      %p60 = por %p58, %p59
      %p61 = scmp.ne.s32.totalorder %s53, %s55
      %p62 = scmp.eq.s32.totalorder %s24, 1
      %p63 = por %p61, %p62
      %p64 = scmp.ne.s32.totalorder %s55, %s56
      %p65 = scmp.eq.s32.totalorder %s24, 0
      %p66 = por %p64, %p65
      %p67 = scmp.ne.s32.totalorder %s55, %s56
      %p68 = scmp.eq.s32.totalorder %s25, 1
      %p69 = por %p67, %p68
      %p71 = scmp.ne.s32.totalorder %s56, %s70
      %p72 = scmp.eq.s32.totalorder %s25, 0
      %p73 = por %p71, %p72
      %s75 = sadd.s32 %s74, 1
      %p78 = scmp.eq.s32.totalorder %s19, 1
      %p79 = scmp.ne.s32.totalorder %s74, %s76
      %p80 = scmp.eq.s32.totalorder %s19, 0
      %p81 = por %p79, %p80
      %p82 = scmp.ne.s32.totalorder %s74, %s76
      %p83 = scmp.eq.s32.totalorder %s24, 1
      %p84 = por %p82, %p83
      %p85 = scmp.ne.s32.totalorder %s76, %s77
      %p86 = scmp.eq.s32.totalorder %s24, 0
      %p87 = por %p85, %p86
      %p88 = scmp.ne.s32.totalorder %s76, %s77
      %p89 = scmp.eq.s32.totalorder %s25, 1
      %p90 = por %p88, %p89
      %p92 = scmp.ne.s32.totalorder %s77, %s91
      %p93 = scmp.eq.s32.totalorder %s25, 0
      %p94 = por %p92, %p93
      %s96 = sadd.s32 %s95, 1
      %p99 = scmp.eq.s32.totalorder %s19, 1
      %p100 = scmp.ne.s32.totalorder %s95, %s97
      %p101 = scmp.eq.s32.totalorder %s19, 0
      %p102 = por %p100, %p101
      %p103 = scmp.ne.s32.totalorder %s95, %s97
      %p104 = scmp.eq.s32.totalorder %s24, 1
      %p105 = por %p103, %p104
      %p106 = scmp.ne.s32.totalorder %s97, %s98
      %p107 = scmp.eq.s32.totalorder %s24, 0
      %p108 = por %p106, %p107
      %p109 = scmp.ne.s32.totalorder %s97, %s98
      %p110 = scmp.eq.s32.totalorder %s25, 1
      %p111 = por %p109, %p110
      %p113 = scmp.ne.s32.totalorder %s98, %s112
      %p114 = scmp.eq.s32.totalorder %s25, 0
      %p115 = por %p113, %p114
      %s117 = sadd.s32 %s116, 1
      %p120 = scmp.eq.s32.totalorder %s19, 1
      %p121 = scmp.ne.s32.totalorder %s116, %s118
      %p122 = scmp.eq.s32.totalorder %s19, 0
      %p123 = por %p121, %p122
      %p124 = scmp.ne.s32.totalorder %s116, %s118
      %p125 = scmp.eq.s32.totalorder %s24, 1
      %p126 = por %p124, %p125
      %p127 = scmp.ne.s32.totalorder %s118, %s119
      %p128 = scmp.eq.s32.totalorder %s24, 0
      %p129 = por %p127, %p128
      %p130 = scmp.ne.s32.totalorder %s118, %s119
      %p131 = scmp.eq.s32.totalorder %s25, 1
      %p132 = por %p130, %p131
      %p134 = scmp.ne.s32.totalorder %s119, %s133
      %p135 = scmp.eq.s32.totalorder %s25, 0
      %p136 = por %p134, %p135
      %s138 = sadd.s32 %s137, 1
      %p141 = scmp.eq.s32.totalorder %s19, 1
      %p142 = scmp.ne.s32.totalorder %s137, %s139
      %p143 = scmp.eq.s32.totalorder %s19, 0
      %p144 = por %p142, %p143
      %p145 = scmp.ne.s32.totalorder %s137, %s139
      %p146 = scmp.eq.s32.totalorder %s24, 1
      %p147 = por %p145, %p146
      %p148 = scmp.ne.s32.totalorder %s139, %s140
      %p149 = scmp.eq.s32.totalorder %s24, 0
      %p150 = por %p148, %p149
      %p151 = scmp.ne.s32.totalorder %s139, %s140
      %p152 = scmp.eq.s32.totalorder %s25, 1
      %p153 = por %p151, %p152
      %p155 = scmp.ne.s32.totalorder %s140, %s154
      %p156 = scmp.eq.s32.totalorder %s25, 0
      %p157 = por %p155, %p156
      %s158 = ssub.s32 %s19, %s26
      %p159 = scmp.eq.s32.totalorder %s158, 0
      %s161 = sadd.s32 %s160, 1
      %s162 = scalar_select %p159, %s160, %s161
      %p165 = pneg %p159
      %p166 = scmp.eq.s32.totalorder %s19, 1
      %p167 = por %p165, %p166
      %p168 = scmp.ne.s32.totalorder %s160, %s163
      %p169 = scmp.eq.s32.totalorder %s19, 0
      %p170 = por %p168, %p169
      %p171 = scmp.ne.s32.totalorder %s160, %s163
      %p172 = scmp.eq.s32.totalorder %s24, 1
      %p173 = por %p171, %p172
      %p174 = scmp.ne.s32.totalorder %s163, %s164
      %p175 = scmp.eq.s32.totalorder %s24, 0
      %p176 = por %p174, %p175
      %p177 = scmp.ne.s32.totalorder %s163, %s164
      %p178 = scmp.eq.s32.totalorder %s25, 1
      %p179 = por %p177, %p178
      %p181 = scmp.ne.s32.totalorder %s164, %s180
      %p182 = scmp.eq.s32.totalorder %s25, 0
      %p183 = por %p181, %p182
      %p184 = scmp.le.s32.totalorder 1, %s19
      %p185 = scmp.lt.s32.totalorder %s19, 3
      %p186 = pnand %p184, %p185
      %p187 = pneg %p186
      // Predicated region
      $region9: #{spatial_coord_attention.1} parent=5 // pred_check
        _
      $region10: #{spatial_coord_attention.1} parent=5 // pred_check_branch
        %189 = sbr.rel (%p186) target = $region12
      $region11: #{spatial_coord_attention.1} parent=5 // pred_region
        %s190 = ssub.s32 %s19, 1
        // Predicated region
        $region13: #{spatial_coord_attention.1} parent=11 // pred_check
          %p191 = pneg %p66
        $region14: #{spatial_coord_attention.1} parent=11 // pred_check_branch
          %193 = sbr.rel (%p191) target = $region16
        $region15: #{spatial_coord_attention.1} parent=11 // pred_region
          %s195 = ssub.s32 16, 16
          %196 = vsyncadd [#allocation5], %s195
          %s198 = sshll.u32 %s1, 4
          %s199 = int_to_ptr.vmem [resolvable:$true] %s198
          %201 = dma.vmem_to_smem %s199, 16, [#allocation6], [#allocation5]
        $region16: #{spatial_coord_attention.1} parent=11 // pred_fallthru
          _
        // Predicated region
        $region17: #{spatial_coord_attention.1} parent=11 // pred_check
          %p202 = pneg %p87
        $region18: #{spatial_coord_attention.1} parent=11 // pred_check_branch
          %204 = sbr.rel (%p202) target = $region20
        $region19: #{spatial_coord_attention.1} parent=11 // pred_region
          _
        $region20: #{spatial_coord_attention.1} parent=11 // pred_fallthru
          _
        // Predicated region
        $region21: #{spatial_coord_attention.1} parent=11 // pred_check
          %p205 = pneg %p108
        $region22: #{spatial_coord_attention.1} parent=11 // pred_check_branch
          %207 = sbr.rel (%p205) target = $region24
        $region23: #{spatial_coord_attention.1} parent=11 // pred_region
          _
        $region24: #{spatial_coord_attention.1} parent=11 // pred_fallthru
          _
        // Predicated region
        $region25: #{spatial_coord_attention.1} parent=11 // pred_check
          %p208 = pneg %p129
        $region26: #{spatial_coord_attention.1} parent=11 // pred_check_branch
          %210 = sbr.rel (%p208) target = $region28
        $region27: #{spatial_coord_attention.1} parent=11 // pred_region
          _
        $region28: #{spatial_coord_attention.1} parent=11 // pred_fallthru
          _
        // Predicated region
        $region29: #{spatial_coord_attention.1} parent=11 // pred_check
          %p211 = pneg %p150
        $region30: #{spatial_coord_attention.1} parent=11 // pred_check_branch
          %213 = sbr.rel (%p211) target = $region32
        $region31: #{spatial_coord_attention.1} parent=11 // pred_region
          _
        $region32: #{spatial_coord_attention.1} parent=11 // pred_fallthru
          _
      $region12: #{spatial_coord_attention.1} parent=5 // pred_fallthru
        _
      %p214 = scmp.lt.s32.totalorder %s19, 2
      // Predicated region
      $region33: #{spatial_coord_attention.1} parent=5 // pred_check
        %p215 = pneg %p214
      $region34: #{spatial_coord_attention.1} parent=5 // pred_check_branch
        %217 = sbr.rel (%p215) target = $region36
      $region35: #{spatial_coord_attention.1} parent=5 // pred_region
        // Predicated region
        $region37: #{spatial_coord_attention.1} parent=35 // pred_check
          %p218 = pneg %p39
        $region38: #{spatial_coord_attention.1} parent=35 // pred_check_branch
          %220 = sbr.rel (%p218) target = $region40
        $region39: #{spatial_coord_attention.1} parent=35 // pred_region
          %s221 = sand.u32 %s29, 1
          %s222 = scalar_lea.sflag [#allocation3], %s221
          %s223 = sand.u32 %s29, 1
          %s224 = smul.addr %s223, 256
          %s225 = scalar_lea.vmem [#allocation2], %s224
          %s227 = ssub.s32 4096, 4096
          %228 = vsyncadd %s222, %s227
          %s229 = smul.addr %s19, 32
          %s230 = smul.addr %s229, 128
          %s231 = scalar_lea.hbm %s0, %s230
          %s232 = sshll.u32 %s225, 4
          %s233 = int_to_ptr.vmem [resolvable:$true] %s232
          %238 = dma.hbm_to_vmem [thread:$0]  %s231, 4096, %s233, %s222, 128, 128, 8
        $region40: #{spatial_coord_attention.1} parent=35 // pred_fallthru
          _
      $region36: #{spatial_coord_attention.1} parent=5 // pred_fallthru
        _
      %p239 = scmp.le.s32.totalorder 1, %s19
      %p240 = scmp.lt.s32.totalorder %s19, 3
      %p241 = pnand %p239, %p240
      %p242 = pneg %p241
      // Predicated region
      $region41: #{spatial_coord_attention.1} parent=5 // pred_check
        _
      $region42: #{spatial_coord_attention.1} parent=5 // pred_check_branch
        %244 = sbr.rel (%p241) target = $region44
      $region43: #{spatial_coord_attention.1} parent=5 // pred_region
        %s245 = ssub.s32 %s19, 1
        %s246 = sand.u32 %s32, 1
        %s247 = scalar_lea.sflag [#allocation3], %s246
        %s248 = sand.u32 %s32, 1
        %s249 = smul.addr %s248, 256
        %s250 = scalar_lea.vmem [#allocation2], %s249
        // Predicated region
        $region45: #{spatial_coord_attention.1} parent=43 // pred_check
          %p251 = pneg %p45
        $region46: #{spatial_coord_attention.1} parent=43 // pred_check_branch
          %253 = sbr.rel (%p251) target = $region48
        $region47: #{spatial_coord_attention.1} parent=43 // pred_region
          %254 = dma.done %s247, 4096
        $region48: #{spatial_coord_attention.1} parent=43 // pred_fallthru
          _
        // Predicated region
        $region49: #{spatial_coord_attention.1} parent=43 // pred_check
          %p255 = pneg %p66
        $region50: #{spatial_coord_attention.1} parent=43 // pred_check_branch
          %257 = sbr.rel (%p255) target = $region52
        $region51: #{spatial_coord_attention.1} parent=43 // pred_region
          %258 = dma.done [#allocation5], 16
        $region52: #{spatial_coord_attention.1} parent=43 // pred_fallthru
          _
        %259 = sfence
        %s260 = sand.u32 %s32, 1
        %s261 = scalar_lea.sflag [#allocation3], %s260
        %s262 = sand.u32 %s32, 1
        %s263 = smul.addr %s262, 256
        %s264 = scalar_lea.vmem [#allocation2], %s263
        %p265 = pneg %p45
        %p266 = pneg %p42
        %p267 = pneg %p66
        %p268 = pneg %p63
        %p269 = pneg %p87
        %p270 = pneg %p84
        %p271 = pneg %p108
        %p272 = pneg %p105
        %p273 = pneg %p129
        %p274 = pneg %p126
        %p275 = pneg %p150
        %p276 = pneg %p147
        %p277 = pneg %p176
        %p278 = pneg %p173
        %s279 = sand.u32 %s163, 1
        %s280 = scalar_lea.sflag [#allocation4], %s279
        %s281 = sand.u32 %s163, 1
        %s282 = smul.addr %s281, 256
        %s283 = scalar_lea.vmem [#allocation7], %s282
        %v284 = vld [vmem:[%s250] sm:$0xff]
        %v285 = vld [vmem:[%s250 + $0x8] sm:$0xff]
        %v286 = vld [vmem:[%s250 + $0x10] sm:$0xff]
        %v287 = vld [vmem:[%s250 + $0x18] sm:$0xff]
        %v288 = vld [vmem:[%s250 + $0x20] sm:$0xff]
        %v289 = vld [vmem:[%s250 + $0x28] sm:$0xff]
        %v290 = vld [vmem:[%s250 + $0x30] sm:$0xff]
        %v291 = vld [vmem:[%s250 + $0x38] sm:$0xff]
        %v292 = vld [vmem:[%s250 + $0x40] sm:$0xff]
        %v293 = vld [vmem:[%s250 + $0x48] sm:$0xff]
        %v294 = vld [vmem:[%s250 + $0x50] sm:$0xff]
        %v295 = vld [vmem:[%s250 + $0x58] sm:$0xff]
        %v296 = vld [vmem:[%s250 + $0x60] sm:$0xff]
        %v297 = vld [vmem:[%s250 + $0x68] sm:$0xff]
        %v298 = vld [vmem:[%s250 + $0x70] sm:$0xff]
        %v299 = vld [vmem:[%s250 + $0x78] sm:$0xff]
        %v300 = vld [vmem:[%s250 + $0x80] sm:$0xff]
        %v301 = vld [vmem:[%s250 + $0x88] sm:$0xff]
        %v302 = vld [vmem:[%s250 + $0x90] sm:$0xff]
        %v303 = vld [vmem:[%s250 + $0x98] sm:$0xff]
        %v304 = vld [vmem:[%s250 + $0xa0] sm:$0xff]
        %v305 = vld [vmem:[%s250 + $0xa8] sm:$0xff]
        %v306 = vld [vmem:[%s250 + $0xb0] sm:$0xff]
        %v307 = vld [vmem:[%s250 + $0xb8] sm:$0xff]
        %v308 = vld [vmem:[%s250 + $0xc0] sm:$0xff]
        %v309 = vld [vmem:[%s250 + $0xc8] sm:$0xff]
        %v310 = vld [vmem:[%s250 + $0xd0] sm:$0xff]
        %v311 = vld [vmem:[%s250 + $0xd8] sm:$0xff]
        %v312 = vld [vmem:[%s250 + $0xe0] sm:$0xff]
        %v313 = vld [vmem:[%s250 + $0xe8] sm:$0xff]
        %v314 = vld [vmem:[%s250 + $0xf0] sm:$0xff]
        %v315 = vld [vmem:[%s250 + $0xf8] sm:$0xff]
        %vm316 = vcmask 130048
        %v317 = vsel %vm316, %v284, 0.0
        %v318 = vsel %vm316, %v286, 0.0
        %v319 = vadd.f32 %v317, %v318
        %v320 = vsel %vm316, %v288, 0.0
        %v321 = vadd.f32 %v319, %v320
        %v322 = vsel %vm316, %v290, 0.0
        %v323 = vadd.f32 %v321, %v322
        %v324 = vsel %vm316, %v292, 0.0
        %v325 = vadd.f32 %v323, %v324
        %v326 = vsel %vm316, %v294, 0.0
        %v327 = vadd.f32 %v325, %v326
        %v328 = vsel %vm316, %v296, 0.0
        %v329 = vadd.f32 %v327, %v328
        %v330 = vsel %vm316, %v298, 0.0
        %v331 = vadd.f32 %v329, %v330
        %v332 = vsel %vm316, %v300, 0.0
        %v333 = vadd.f32 %v331, %v332
        %v334 = vsel %vm316, %v302, 0.0
        %v335 = vadd.f32 %v333, %v334
        %v336 = vsel %vm316, %v304, 0.0
        %v337 = vadd.f32 %v335, %v336
        %v338 = vsel %vm316, %v306, 0.0
        %v339 = vadd.f32 %v337, %v338
        %v340 = vsel %vm316, %v308, 0.0
        %v341 = vadd.f32 %v339, %v340
        %v342 = vsel %vm316, %v310, 0.0
        %v343 = vadd.f32 %v341, %v342
        %v344 = vsel %vm316, %v312, 0.0
        %v345 = vadd.f32 %v343, %v344
        %v346 = vsel %vm316, %v314, 0.0
        %v347 = vadd.f32 %v345, %v346
        %v348 = vsel %vm316, %v285, 0.0
        %v349 = vsel %vm316, %v287, 0.0
        %v350 = vadd.f32 %v348, %v349
        %v351 = vsel %vm316, %v289, 0.0
        %v352 = vadd.f32 %v350, %v351
        %v353 = vsel %vm316, %v291, 0.0
        %v354 = vadd.f32 %v352, %v353
        %v355 = vsel %vm316, %v293, 0.0
        %v356 = vadd.f32 %v354, %v355
        %v357 = vsel %vm316, %v295, 0.0
        %v358 = vadd.f32 %v356, %v357
        %v359 = vsel %vm316, %v297, 0.0
        %v360 = vadd.f32 %v358, %v359
        %v361 = vsel %vm316, %v299, 0.0
        %v362 = vadd.f32 %v360, %v361
        %v363 = vsel %vm316, %v301, 0.0
        %v364 = vadd.f32 %v362, %v363
        %v365 = vsel %vm316, %v303, 0.0
        %v366 = vadd.f32 %v364, %v365
        %v367 = vsel %vm316, %v305, 0.0
        %v368 = vadd.f32 %v366, %v367
        %v369 = vsel %vm316, %v307, 0.0
        %v370 = vadd.f32 %v368, %v369
        %v371 = vsel %vm316, %v309, 0.0
        %v372 = vadd.f32 %v370, %v371
        %v373 = vsel %vm316, %v311, 0.0
        %v374 = vadd.f32 %v372, %v373
        %v375 = vsel %vm316, %v313, 0.0
        %v376 = vadd.f32 %v374, %v375
        %v377 = vsel %vm316, %v315, 0.0
        %v378 = vadd.f32 %v376, %v377
        %v379 = vrcp.pop 16.0
        %v380 = vmul.f32 %v347, %v379
        %v381 = vmul.f32 %v378, %v379
        %vm384 = vcmask 1040384
        %v385 = vrot.slane %v380, 7
        %v386 = vrot.slane %v381, 7
        %v387 = vsel %vm384, %v385, %v386
        %v390 = vsel %vm384, 0.0, %v385
        %v391 = vsel %vm384, %v386, 0.0
        %394 = vrot.lane.b32.xlu0 %v390, 1
        %v395 = vpop.permute.xlu0 %394
        %396 = vrot.lane.b32.xlu0 %v387, 1
        %v397 = vpop.permute.xlu0 %396
        %398 = vrot.lane.b32.xlu0 %v391, 1
        %v399 = vpop.permute.xlu0 %398
        %vm403 = vcmask 7168
        %v404 = vsel %vm403, 0.0, %v395
        %v405 = vsel %vm403, 0.0, %v397
        %v406 = vsel %vm403, 0.0, %v399
        %vm407 = vcmask 138240
        %v408 = vsel %vm407, %v404, 0.0
        %v409 = vsel %vm407, %v405, 0.0
        %v410 = vsel %vm407, %v406, 0.0
        %v411 = vsel %vm316, %v284, -inf
        %v412 = vsel %vm316, %v286, -inf
        %v413 = vsel %vm316, %v288, -inf
        %v414 = vmax.f32 %v411, %v413
        %v415 = vsel %vm316, %v290, -inf
        %v416 = vmax.f32 %v412, %v415
        %v417 = vsel %vm316, %v292, -inf
        %v418 = vmax.f32 %v414, %v417
        %v419 = vsel %vm316, %v294, -inf
        %v420 = vmax.f32 %v416, %v419
        %v421 = vsel %vm316, %v296, -inf
        %v422 = vmax.f32 %v418, %v421
        %v423 = vsel %vm316, %v298, -inf
        %v424 = vmax.f32 %v420, %v423
        %v425 = vsel %vm316, %v300, -inf
        %v426 = vmax.f32 %v422, %v425
        %v427 = vsel %vm316, %v302, -inf
        %v428 = vmax.f32 %v424, %v427
        %v429 = vsel %vm316, %v304, -inf
        %v430 = vmax.f32 %v426, %v429
        %v431 = vsel %vm316, %v306, -inf
        %v432 = vmax.f32 %v428, %v431
        %v433 = vsel %vm316, %v308, -inf
        %v434 = vmax.f32 %v430, %v433
        %v435 = vsel %vm316, %v310, -inf
        %v436 = vmax.f32 %v432, %v435
        %v437 = vsel %vm316, %v312, -inf
        %v438 = vmax.f32 %v434, %v437
        %v439 = vsel %vm316, %v314, -inf
        %v440 = vmax.f32 %v436, %v439
        %v441 = vmax.f32 %v438, %v440
        %v442 = vsel %vm316, %v285, -inf
        %v443 = vsel %vm316, %v287, -inf
        %v444 = vsel %vm316, %v289, -inf
        %v445 = vmax.f32 %v442, %v444
        %v446 = vsel %vm316, %v291, -inf
        %v447 = vmax.f32 %v443, %v446
        %v448 = vsel %vm316, %v293, -inf
        %v449 = vmax.f32 %v445, %v448
        %v450 = vsel %vm316, %v295, -inf
        %v451 = vmax.f32 %v447, %v450
        %v452 = vsel %vm316, %v297, -inf
        %v453 = vmax.f32 %v449, %v452
        %v454 = vsel %vm316, %v299, -inf
        %v455 = vmax.f32 %v451, %v454
        %v456 = vsel %vm316, %v301, -inf
        %v457 = vmax.f32 %v453, %v456
        %v458 = vsel %vm316, %v303, -inf
        %v459 = vmax.f32 %v455, %v458
        %v460 = vsel %vm316, %v305, -inf
        %v461 = vmax.f32 %v457, %v460
        %v462 = vsel %vm316, %v307, -inf
        %v463 = vmax.f32 %v459, %v462
        %v464 = vsel %vm316, %v309, -inf
        %v465 = vmax.f32 %v461, %v464
        %v466 = vsel %vm316, %v311, -inf
        %v467 = vmax.f32 %v463, %v466
        %v468 = vsel %vm316, %v313, -inf
        %v469 = vmax.f32 %v465, %v468
        %v470 = vsel %vm316, %v315, -inf
        %v471 = vmax.f32 %v467, %v470
        %v472 = vmax.f32 %v469, %v471
        %v475 = vrot.slane %v441, 7
        %v476 = vrot.slane %v472, 7
        %v477 = vsel %vm384, %v475, %v476
        %v480 = vsel %vm384, 0.0, %v475
        %v481 = vsel %vm384, %v476, 0.0
        %484 = vrot.lane.b32.xlu0 %v480, 1
        %v485 = vpop.permute.xlu0 %484
        %486 = vrot.lane.b32.xlu0 %v477, 1
        %v487 = vpop.permute.xlu0 %486
        %488 = vrot.lane.b32.xlu0 %v481, 1
        %v489 = vpop.permute.xlu0 %488
        %v493 = vsel %vm403, 0.0, %v485
        %v494 = vsel %vm403, 0.0, %v487
        %v495 = vsel %vm403, 0.0, %v489
        %v496 = vsel %vm407, %v493, 0.0
        %v497 = vsel %vm407, %v494, 0.0
        %v498 = vsel %vm407, %v495, 0.0
        %s499 = sld [smem:[#allocation6]]
        %v500 = vstv %s499
        %v501 = vmul.f32 %v408, %v500
        %v502 = vmul.f32 %v409, %v500
        %v503 = vadd.f32 %v501, 0.0
        %v504 = vadd.f32 %v502, 0.0
        %s505 = sld [smem:[#allocation6 + $0x1]]
        %v506 = vstv %s505
        %v507 = vmul.f32 %v408, %v506
        %v508 = vmul.f32 %v409, %v506
        %511 = vrot.lane.b32.xlu0 %v507, 127
        %v512 = vpop.permute.xlu0 %511
        %513 = vrot.lane.b32.xlu0 %v508, 127
        %v514 = vpop.permute.xlu0 %513
        %v517 = vadd.f32 %v503, %v512
        %v518 = vadd.f32 %v504, %v514
        %s519 = sld [smem:[#allocation6 + $0x2]]
        %v520 = vstv %s519
        %v521 = vmul.f32 %v408, %v520
        %v522 = vmul.f32 %v409, %v520
        %525 = vrot.lane.b32.xlu0 %v521, 126
        %v526 = vpop.permute.xlu0 %525
        %527 = vrot.lane.b32.xlu0 %v522, 126
        %v528 = vpop.permute.xlu0 %527
        %v531 = vadd.f32 %v517, %v526
        %v532 = vadd.f32 %v518, %v528
        %s533 = sld [smem:[#allocation6 + $0x3]]
        %v534 = vstv %s533
        %v535 = vmul.f32 %v408, %v534
        %v536 = vmul.f32 %v409, %v534
        %v537 = vmul.f32 %v410, %v534
        %vm541 = vcmask 1046528
        %v542 = vrot.slane %v535, 1
        %v543 = vrot.slane %v536, 1
        %v544 = vsel %vm541, %v542, %v543
        %v545 = vrot.slane %v537, 1
        %v546 = vsel %vm541, %v543, %v545
        %v549 = vadd.f32 %v531, %v544
        %v550 = vadd.f32 %v532, %v546
        %s551 = sld [smem:[#allocation6 + $0x4]]
        %v552 = vstv %s551
        %v553 = vmul.f32 %v408, %v552
        %v554 = vmul.f32 %v409, %v552
        %v555 = vmul.f32 %v410, %v552
        %v559 = vrot.slane %v553, 1
        %v560 = vrot.slane %v554, 1
        %v561 = vsel %vm541, %v559, %v560
        %v562 = vrot.slane %v555, 1
        %v563 = vsel %vm541, %v560, %v562
        %564 = vrot.lane.b32.xlu0 %v561, 127
        %v565 = vpop.permute.xlu0 %564
        %566 = vrot.lane.b32.xlu0 %v563, 127
        %v567 = vpop.permute.xlu0 %566
        %v570 = vadd.f32 %v549, %v565
        %v571 = vadd.f32 %v550, %v567
        %s572 = sld [smem:[#allocation6 + $0x5]]
        %v573 = vstv %s572
        %v574 = vmul.f32 %v408, %v573
        %v575 = vmul.f32 %v409, %v573
        %v576 = vmul.f32 %v410, %v573
        %v580 = vrot.slane %v574, 1
        %v581 = vrot.slane %v575, 1
        %v582 = vsel %vm541, %v580, %v581
        %v583 = vrot.slane %v576, 1
        %v584 = vsel %vm541, %v581, %v583
        %585 = vrot.lane.b32.xlu0 %v582, 126
        %v586 = vpop.permute.xlu0 %585
        %587 = vrot.lane.b32.xlu0 %v584, 126
        %v588 = vpop.permute.xlu0 %587
        %v591 = vadd.f32 %v570, %v586
        %v592 = vadd.f32 %v571, %v588
        %s593 = sld [smem:[#allocation6 + $0x6]]
        %v594 = vstv %s593
        %v595 = vmul.f32 %v408, %v594
        %v596 = vmul.f32 %v409, %v594
        %v597 = vmul.f32 %v410, %v594
        %vm601 = vcmask 1045504
        %v602 = vrot.slane %v595, 2
        %v603 = vrot.slane %v596, 2
        %v604 = vsel %vm601, %v602, %v603
        %v605 = vrot.slane %v597, 2
        %v606 = vsel %vm601, %v603, %v605
        %v609 = vadd.f32 %v591, %v604
        %v610 = vadd.f32 %v592, %v606
        %s611 = sld [smem:[#allocation6 + $0x7]]
        %v612 = vstv %s611
        %v613 = vmul.f32 %v408, %v612
        %v614 = vmul.f32 %v409, %v612
        %v615 = vmul.f32 %v410, %v612
        %v619 = vrot.slane %v613, 2
        %v620 = vrot.slane %v614, 2
        %v621 = vsel %vm601, %v619, %v620
        %v622 = vrot.slane %v615, 2
        %v623 = vsel %vm601, %v620, %v622
        %624 = vrot.lane.b32.xlu0 %v621, 127
        %v625 = vpop.permute.xlu0 %624
        %626 = vrot.lane.b32.xlu0 %v623, 127
        %v627 = vpop.permute.xlu0 %626
        %v630 = vadd.f32 %v609, %v625
        %v631 = vadd.f32 %v610, %v627
        %s632 = sld [smem:[#allocation6 + $0x8]]
        %v633 = vstv %s632
        %v634 = vmul.f32 %v408, %v633
        %v635 = vmul.f32 %v409, %v633
        %v636 = vmul.f32 %v410, %v633
        %v640 = vrot.slane %v634, 2
        %v641 = vrot.slane %v635, 2
        %v642 = vsel %vm601, %v640, %v641
        %v643 = vrot.slane %v636, 2
        %v644 = vsel %vm601, %v641, %v643
        %645 = vrot.lane.b32.xlu0 %v642, 126
        %v646 = vpop.permute.xlu0 %645
        %647 = vrot.lane.b32.xlu0 %v644, 126
        %v648 = vpop.permute.xlu0 %647
        %v651 = vadd.f32 %v630, %v646
        %v652 = vadd.f32 %v631, %v648
        %s653 = sld [smem:[#allocation6 + $0x9]]
        %v654 = vstv %s653
        %v655 = vmul.f32 %v496, %v654
        %v656 = vmul.f32 %v497, %v654
        %v657 = vadd.f32 %v651, %v655
        %v658 = vadd.f32 %v652, %v656
        %s659 = sld [smem:[#allocation6 + $0xa]]
        %v660 = vstv %s659
        %v661 = vmul.f32 %v496, %v660
        %v662 = vmul.f32 %v497, %v660
        %665 = vrot.lane.b32.xlu0 %v661, 127
        %v666 = vpop.permute.xlu0 %665
        %667 = vrot.lane.b32.xlu0 %v662, 127
        %v668 = vpop.permute.xlu0 %667
        %v671 = vadd.f32 %v657, %v666
        %v672 = vadd.f32 %v658, %v668
        %s673 = sld [smem:[#allocation6 + $0xb]]
        %v674 = vstv %s673
        %v675 = vmul.f32 %v496, %v674
        %v676 = vmul.f32 %v497, %v674
        %679 = vrot.lane.b32.xlu0 %v675, 126
        %v680 = vpop.permute.xlu0 %679
        %681 = vrot.lane.b32.xlu0 %v676, 126
        %v682 = vpop.permute.xlu0 %681
        %v685 = vadd.f32 %v671, %v680
        %v686 = vadd.f32 %v672, %v682
        %s687 = sld [smem:[#allocation6 + $0xc]]
        %v688 = vstv %s687
        %v689 = vmul.f32 %v496, %v688
        %v690 = vmul.f32 %v497, %v688
        %v691 = vmul.f32 %v498, %v688
        %v695 = vrot.slane %v689, 1
        %v696 = vrot.slane %v690, 1
        %v697 = vsel %vm541, %v695, %v696
        %v698 = vrot.slane %v691, 1
        %v699 = vsel %vm541, %v696, %v698
        %v702 = vadd.f32 %v685, %v697
        %v703 = vadd.f32 %v686, %v699
        %s704 = sld [smem:[#allocation6 + $0xd]]
        %v705 = vstv %s704
        %v706 = vmul.f32 %v496, %v705
        %v707 = vmul.f32 %v497, %v705
        %v708 = vmul.f32 %v498, %v705
        %v712 = vrot.slane %v706, 1
        %v713 = vrot.slane %v707, 1
        %v714 = vsel %vm541, %v712, %v713
        %v715 = vrot.slane %v708, 1
        %v716 = vsel %vm541, %v713, %v715
        %717 = vrot.lane.b32.xlu0 %v714, 127
        %v718 = vpop.permute.xlu0 %717
        %719 = vrot.lane.b32.xlu0 %v716, 127
        %v720 = vpop.permute.xlu0 %719
        %v723 = vadd.f32 %v702, %v718
        %v724 = vadd.f32 %v703, %v720
        %s725 = sld [smem:[#allocation6 + $0xe]]
        %v726 = vstv %s725
        %v727 = vmul.f32 %v496, %v726
        %v728 = vmul.f32 %v497, %v726
        %v729 = vmul.f32 %v498, %v726
        %v733 = vrot.slane %v727, 1
        %v734 = vrot.slane %v728, 1
        %v735 = vsel %vm541, %v733, %v734
        %v736 = vrot.slane %v729, 1
        %v737 = vsel %vm541, %v734, %v736
        %738 = vrot.lane.b32.xlu0 %v735, 126
        %v739 = vpop.permute.xlu0 %738
        %740 = vrot.lane.b32.xlu0 %v737, 126
        %v741 = vpop.permute.xlu0 %740
        %v744 = vadd.f32 %v723, %v739
        %v745 = vadd.f32 %v724, %v741
        %s746 = sld [smem:[#allocation6 + $0xf]]
        %v747 = vstv %s746
        %v748 = vmul.f32 %v496, %v747
        %v749 = vmul.f32 %v497, %v747
        %v750 = vmul.f32 %v498, %v747
        %v754 = vrot.slane %v748, 2
        %v755 = vrot.slane %v749, 2
        %v756 = vsel %vm601, %v754, %v755
        %v757 = vrot.slane %v750, 2
        %v758 = vsel %vm601, %v755, %v757
        %v761 = vadd.f32 %v744, %v756
        %v762 = vadd.f32 %v745, %v758
        %s763 = sld [smem:[#allocation6 + $0x10]]
        %v764 = vstv %s763
        %v765 = vmul.f32 %v496, %v764
        %v766 = vmul.f32 %v497, %v764
        %v767 = vmul.f32 %v498, %v764
        %v771 = vrot.slane %v765, 2
        %v772 = vrot.slane %v766, 2
        %v773 = vsel %vm601, %v771, %v772
        %v774 = vrot.slane %v767, 2
        %v775 = vsel %vm601, %v772, %v774
        %776 = vrot.lane.b32.xlu0 %v773, 127
        %v777 = vpop.permute.xlu0 %776
        %778 = vrot.lane.b32.xlu0 %v775, 127
        %v779 = vpop.permute.xlu0 %778
        %v782 = vadd.f32 %v761, %v777
        %v783 = vadd.f32 %v762, %v779
        %s784 = sld [smem:[#allocation6 + $0x11]]
        %v785 = vstv %s784
        %v786 = vmul.f32 %v496, %v785
        %v787 = vmul.f32 %v497, %v785
        %v788 = vmul.f32 %v498, %v785
        %v792 = vrot.slane %v786, 2
        %v793 = vrot.slane %v787, 2
        %v794 = vsel %vm601, %v792, %v793
        %v795 = vrot.slane %v788, 2
        %v796 = vsel %vm601, %v793, %v795
        %797 = vrot.lane.b32.xlu0 %v794, 126
        %v798 = vpop.permute.xlu0 %797
        %799 = vrot.lane.b32.xlu0 %v796, 126
        %v800 = vpop.permute.xlu0 %799
        %v803 = vadd.f32 %v782, %v798
        %v804 = vadd.f32 %v783, %v800
        %v805 = vxor.u32 %v803, 2147483648
        %v806 = vxor.u32 %v804, 2147483648
        %v807 = vmul.f32 %v805, 1.442695
        %v808 = vpow.pop %v807
        %v809 = vmul.f32 %v806, 1.442695
        %v810 = vpow.pop %v809
        %v811 = vadd.f32 %v808, 1.0
        %v812 = vadd.f32 %v810, 1.0
        %v813 = vrcp.pop %v811
        %v814 = vmul.f32 1.0, %v813
        %v815 = vrcp.pop %v812
        %v816 = vmul.f32 1.0, %v815
        %817 = vadd.xlane.f32.xlu0 %v317
        %v818 = vpop.xlane.xlu0 %817
        %819 = vadd.xlane.f32.xlu0 %v348
        %v820 = vpop.xlane.xlu0 %819
        %821 = vadd.xlane.f32.xlu0 %v318
        %v822 = vpop.xlane.xlu0 %821
        %823 = vadd.xlane.f32.xlu0 %v349
        %v824 = vpop.xlane.xlu0 %823
        %825 = vadd.xlane.f32.xlu0 %v320
        %v826 = vpop.xlane.xlu0 %825
        %827 = vadd.xlane.f32.xlu0 %v351
        %v828 = vpop.xlane.xlu0 %827
        %829 = vadd.xlane.f32.xlu0 %v322
        %v830 = vpop.xlane.xlu0 %829
        %831 = vadd.xlane.f32.xlu0 %v353
        %v832 = vpop.xlane.xlu0 %831
        %833 = vadd.xlane.f32.xlu0 %v324
        %v834 = vpop.xlane.xlu0 %833
        %835 = vadd.xlane.f32.xlu0 %v355
        %v836 = vpop.xlane.xlu0 %835
        %837 = vadd.xlane.f32.xlu0 %v326
        %v838 = vpop.xlane.xlu0 %837
        %839 = vadd.xlane.f32.xlu0 %v357
        %v840 = vpop.xlane.xlu0 %839
        %841 = vadd.xlane.f32.xlu0 %v328
        %v842 = vpop.xlane.xlu0 %841
        %843 = vadd.xlane.f32.xlu0 %v359
        %v844 = vpop.xlane.xlu0 %843
        %845 = vadd.xlane.f32.xlu0 %v330
        %v846 = vpop.xlane.xlu0 %845
        %847 = vadd.xlane.f32.xlu0 %v361
        %v848 = vpop.xlane.xlu0 %847
        %849 = vadd.xlane.f32.xlu0 %v332
        %v850 = vpop.xlane.xlu0 %849
        %851 = vadd.xlane.f32.xlu0 %v363
        %v852 = vpop.xlane.xlu0 %851
        %853 = vadd.xlane.f32.xlu0 %v334
        %v854 = vpop.xlane.xlu0 %853
        %855 = vadd.xlane.f32.xlu0 %v365
        %v856 = vpop.xlane.xlu0 %855
        %857 = vadd.xlane.f32.xlu0 %v336
        %v858 = vpop.xlane.xlu0 %857
        %859 = vadd.xlane.f32.xlu0 %v367
        %v860 = vpop.xlane.xlu0 %859
        %861 = vadd.xlane.f32.xlu0 %v338
        %v862 = vpop.xlane.xlu0 %861
        %863 = vadd.xlane.f32.xlu0 %v369
        %v864 = vpop.xlane.xlu0 %863
        %865 = vadd.xlane.f32.xlu0 %v340
        %v866 = vpop.xlane.xlu0 %865
        %867 = vadd.xlane.f32.xlu0 %v371
        %v868 = vpop.xlane.xlu0 %867
        %869 = vadd.xlane.f32.xlu0 %v342
        %v870 = vpop.xlane.xlu0 %869
        %871 = vadd.xlane.f32.xlu0 %v373
        %v872 = vpop.xlane.xlu0 %871
        %873 = vadd.xlane.f32.xlu0 %v344
        %v874 = vpop.xlane.xlu0 %873
        %875 = vadd.xlane.f32.xlu0 %v375
        %v876 = vpop.xlane.xlu0 %875
        %877 = vadd.xlane.f32.xlu0 %v346
        %v878 = vpop.xlane.xlu0 %877
        %879 = vadd.xlane.f32.xlu0 %v377
        %v880 = vpop.xlane.xlu0 %879
        %v881 = vmul.f32 %v818, %v379
        %v882 = vmul.f32 %v820, %v379
        %v883 = vmul.f32 %v822, %v379
        %v884 = vmul.f32 %v824, %v379
        %v885 = vmul.f32 %v826, %v379
        %v886 = vmul.f32 %v828, %v379
        %v887 = vmul.f32 %v830, %v379
        %v888 = vmul.f32 %v832, %v379
        %v889 = vmul.f32 %v834, %v379
        %v890 = vmul.f32 %v836, %v379
        %v891 = vmul.f32 %v838, %v379
        %v892 = vmul.f32 %v840, %v379
        %v893 = vmul.f32 %v842, %v379
        %v894 = vmul.f32 %v844, %v379
        %v895 = vmul.f32 %v846, %v379
        %v896 = vmul.f32 %v848, %v379
        %v897 = vmul.f32 %v850, %v379
        %v898 = vmul.f32 %v852, %v379
        %v899 = vmul.f32 %v854, %v379
        %v900 = vmul.f32 %v856, %v379
        %v901 = vmul.f32 %v858, %v379
        %v902 = vmul.f32 %v860, %v379
        %v903 = vmul.f32 %v862, %v379
        %v904 = vmul.f32 %v864, %v379
        %v905 = vmul.f32 %v866, %v379
        %v906 = vmul.f32 %v868, %v379
        %v907 = vmul.f32 %v870, %v379
        %v908 = vmul.f32 %v872, %v379
        %v909 = vmul.f32 %v874, %v379
        %v910 = vmul.f32 %v876, %v379
        %v911 = vmul.f32 %v878, %v379
        %v912 = vmul.f32 %v880, %v379
        %913 = vmax.xlane.f32.xlu0 %v411
        %v914 = vpop.xlane.xlu0 %913
        %915 = vmax.xlane.f32.xlu0 %v442
        %v916 = vpop.xlane.xlu0 %915
        %917 = vmax.xlane.f32.xlu0 %v412
        %v918 = vpop.xlane.xlu0 %917
        %919 = vmax.xlane.f32.xlu0 %v443
        %v920 = vpop.xlane.xlu0 %919
        %921 = vmax.xlane.f32.xlu0 %v413
        %v922 = vpop.xlane.xlu0 %921
        %923 = vmax.xlane.f32.xlu0 %v444
        %v924 = vpop.xlane.xlu0 %923
        %925 = vmax.xlane.f32.xlu0 %v415
        %v926 = vpop.xlane.xlu0 %925
        %927 = vmax.xlane.f32.xlu0 %v446
        %v928 = vpop.xlane.xlu0 %927
        %929 = vmax.xlane.f32.xlu0 %v417
        %v930 = vpop.xlane.xlu0 %929
        %931 = vmax.xlane.f32.xlu0 %v448
        %v932 = vpop.xlane.xlu0 %931
        %933 = vmax.xlane.f32.xlu0 %v419
        %v934 = vpop.xlane.xlu0 %933
        %935 = vmax.xlane.f32.xlu0 %v450
        %v936 = vpop.xlane.xlu0 %935
        %937 = vmax.xlane.f32.xlu0 %v421
        %v938 = vpop.xlane.xlu0 %937
        %939 = vmax.xlane.f32.xlu0 %v452
        %v940 = vpop.xlane.xlu0 %939
        %941 = vmax.xlane.f32.xlu0 %v423
        %v942 = vpop.xlane.xlu0 %941
        %943 = vmax.xlane.f32.xlu0 %v454
        %v944 = vpop.xlane.xlu0 %943
        %945 = vmax.xlane.f32.xlu0 %v425
        %v946 = vpop.xlane.xlu0 %945
        %947 = vmax.xlane.f32.xlu0 %v456
        %v948 = vpop.xlane.xlu0 %947
        %949 = vmax.xlane.f32.xlu0 %v427
        %v950 = vpop.xlane.xlu0 %949
        %951 = vmax.xlane.f32.xlu0 %v458
        %v952 = vpop.xlane.xlu0 %951
        %953 = vmax.xlane.f32.xlu0 %v429
        %v954 = vpop.xlane.xlu0 %953
        %955 = vmax.xlane.f32.xlu0 %v460
        %v956 = vpop.xlane.xlu0 %955
        %957 = vmax.xlane.f32.xlu0 %v431
        %v958 = vpop.xlane.xlu0 %957
        %959 = vmax.xlane.f32.xlu0 %v462
        %v960 = vpop.xlane.xlu0 %959
        %961 = vmax.xlane.f32.xlu0 %v433
        %v962 = vpop.xlane.xlu0 %961
        %963 = vmax.xlane.f32.xlu0 %v464
        %v964 = vpop.xlane.xlu0 %963
        %965 = vmax.xlane.f32.xlu0 %v435
        %v966 = vpop.xlane.xlu0 %965
        %967 = vmax.xlane.f32.xlu0 %v466
        %v968 = vpop.xlane.xlu0 %967
        %969 = vmax.xlane.f32.xlu0 %v437
        %v970 = vpop.xlane.xlu0 %969
        %971 = vmax.xlane.f32.xlu0 %v468
        %v972 = vpop.xlane.xlu0 %971
        %973 = vmax.xlane.f32.xlu0 %v439
        %v974 = vpop.xlane.xlu0 %973
        %975 = vmax.xlane.f32.xlu0 %v470
        %v976 = vpop.xlane.xlu0 %975
        %v1009 = vlaneseq
        %v1010 = vand.u32 %v1009, 127
        %v1011 = vlaneseq
        %v1012 = vshrl.u32 %v1011, 7
        %v1013 = vsub.s32 %v1010, %v1012
        %v1014 = vrot.slane %v881, %v1013
        %v1015 = vadd.s32 %v1010, 4294967288
        %v1016 = vlaneseq
        %v1017 = vshrl.u32 %v1016, 7
        %v1018 = vsub.s32 %v1015, %v1017
        %v1019 = vrot.slane %v882, %v1018
        %vm1020 = vcmask 130112
        %v1021 = vsel %vm1020, %v1019, %v1014
        %v1022 = vlaneseq
        %v1023 = vshrl.u32 %v1022, 7
        %v1024 = vsub.s32 %v1010, %v1023
        %v1025 = vrot.slane %v883, %v1024
        %v1026 = vlaneseq
        %v1027 = vshrl.u32 %v1026, 7
        %v1028 = vsub.s32 %v1015, %v1027
        %v1029 = vrot.slane %v884, %v1028
        %v1030 = vsel %vm1020, %v1029, %v1025
        %v1031 = vlaneseq
        %v1032 = vshrl.u32 %v1031, 7
        %v1033 = vsub.s32 %v1010, %v1032
        %v1034 = vrot.slane %v885, %v1033
        %v1035 = vlaneseq
        %v1036 = vshrl.u32 %v1035, 7
        %v1037 = vsub.s32 %v1015, %v1036
        %v1038 = vrot.slane %v886, %v1037
        %v1039 = vsel %vm1020, %v1038, %v1034
        %v1040 = vlaneseq
        %v1041 = vshrl.u32 %v1040, 7
        %v1042 = vsub.s32 %v1010, %v1041
        %v1043 = vrot.slane %v887, %v1042
        %v1044 = vlaneseq
        %v1045 = vshrl.u32 %v1044, 7
        %v1046 = vsub.s32 %v1015, %v1045
        %v1047 = vrot.slane %v888, %v1046
        %v1048 = vsel %vm1020, %v1047, %v1043
        %v1049 = vlaneseq
        %v1050 = vshrl.u32 %v1049, 7
        %v1051 = vsub.s32 %v1010, %v1050
        %v1052 = vrot.slane %v889, %v1051
        %v1053 = vlaneseq
        %v1054 = vshrl.u32 %v1053, 7
        %v1055 = vsub.s32 %v1015, %v1054
        %v1056 = vrot.slane %v890, %v1055
        %v1057 = vsel %vm1020, %v1056, %v1052
        %v1058 = vlaneseq
        %v1059 = vshrl.u32 %v1058, 7
        %v1060 = vsub.s32 %v1010, %v1059
        %v1061 = vrot.slane %v891, %v1060
        %v1062 = vlaneseq
        %v1063 = vshrl.u32 %v1062, 7
        %v1064 = vsub.s32 %v1015, %v1063
        %v1065 = vrot.slane %v892, %v1064
        %v1066 = vsel %vm1020, %v1065, %v1061
        %v1067 = vlaneseq
        %v1068 = vshrl.u32 %v1067, 7
        %v1069 = vsub.s32 %v1010, %v1068
        %v1070 = vrot.slane %v893, %v1069
        %v1071 = vlaneseq
        %v1072 = vshrl.u32 %v1071, 7
        %v1073 = vsub.s32 %v1015, %v1072
        %v1074 = vrot.slane %v894, %v1073
        %v1075 = vsel %vm1020, %v1074, %v1070
        %v1076 = vlaneseq
        %v1077 = vshrl.u32 %v1076, 7
        %v1078 = vsub.s32 %v1010, %v1077
        %v1079 = vrot.slane %v895, %v1078
        %v1080 = vlaneseq
        %v1081 = vshrl.u32 %v1080, 7
        %v1082 = vsub.s32 %v1015, %v1081
        %v1083 = vrot.slane %v896, %v1082
        %v1084 = vsel %vm1020, %v1083, %v1079
        %v1085 = vlaneseq
        %v1086 = vshrl.u32 %v1085, 7
        %v1087 = vsub.s32 %v1010, %v1086
        %v1088 = vrot.slane %v897, %v1087
        %v1089 = vlaneseq
        %v1090 = vshrl.u32 %v1089, 7
        %v1091 = vsub.s32 %v1015, %v1090
        %v1092 = vrot.slane %v898, %v1091
        %v1093 = vsel %vm1020, %v1092, %v1088
        %v1094 = vlaneseq
        %v1095 = vshrl.u32 %v1094, 7
        %v1096 = vsub.s32 %v1010, %v1095
        %v1097 = vrot.slane %v899, %v1096
        %v1098 = vlaneseq
        %v1099 = vshrl.u32 %v1098, 7
        %v1100 = vsub.s32 %v1015, %v1099
        %v1101 = vrot.slane %v900, %v1100
        %v1102 = vsel %vm1020, %v1101, %v1097
        %v1103 = vlaneseq
        %v1104 = vshrl.u32 %v1103, 7
        %v1105 = vsub.s32 %v1010, %v1104
        %v1106 = vrot.slane %v901, %v1105
        %v1107 = vlaneseq
        %v1108 = vshrl.u32 %v1107, 7
        %v1109 = vsub.s32 %v1015, %v1108
        %v1110 = vrot.slane %v902, %v1109
        %v1111 = vsel %vm1020, %v1110, %v1106
        %v1112 = vlaneseq
        %v1113 = vshrl.u32 %v1112, 7
        %v1114 = vsub.s32 %v1010, %v1113
        %v1115 = vrot.slane %v903, %v1114
        %v1116 = vlaneseq
        %v1117 = vshrl.u32 %v1116, 7
        %v1118 = vsub.s32 %v1015, %v1117
        %v1119 = vrot.slane %v904, %v1118
        %v1120 = vsel %vm1020, %v1119, %v1115
        %v1121 = vlaneseq
        %v1122 = vshrl.u32 %v1121, 7
        %v1123 = vsub.s32 %v1010, %v1122
        %v1124 = vrot.slane %v905, %v1123
        %v1125 = vlaneseq
        %v1126 = vshrl.u32 %v1125, 7
        %v1127 = vsub.s32 %v1015, %v1126
        %v1128 = vrot.slane %v906, %v1127
        %v1129 = vsel %vm1020, %v1128, %v1124
        %v1130 = vlaneseq
        %v1131 = vshrl.u32 %v1130, 7
        %v1132 = vsub.s32 %v1010, %v1131
        %v1133 = vrot.slane %v907, %v1132
        %v1134 = vlaneseq
        %v1135 = vshrl.u32 %v1134, 7
        %v1136 = vsub.s32 %v1015, %v1135
        %v1137 = vrot.slane %v908, %v1136
        %v1138 = vsel %vm1020, %v1137, %v1133
        %v1139 = vlaneseq
        %v1140 = vshrl.u32 %v1139, 7
        %v1141 = vsub.s32 %v1010, %v1140
        %v1142 = vrot.slane %v909, %v1141
        %v1143 = vlaneseq
        %v1144 = vshrl.u32 %v1143, 7
        %v1145 = vsub.s32 %v1015, %v1144
        %v1146 = vrot.slane %v910, %v1145
        %v1147 = vsel %vm1020, %v1146, %v1142
        %v1148 = vlaneseq
        %v1149 = vshrl.u32 %v1148, 7
        %v1150 = vsub.s32 %v1010, %v1149
        %v1151 = vrot.slane %v911, %v1150
        %v1152 = vlaneseq
        %v1153 = vshrl.u32 %v1152, 7
        %v1154 = vsub.s32 %v1015, %v1153
        %v1155 = vrot.slane %v912, %v1154
        %v1156 = vsel %vm1020, %v1155, %v1151
        %vm1157 = vcmask 1041409
        %v1158 = vsel %vm1157, %v1030, %v1021
        %vm1159 = vcmask 1042434
        %v1160 = vsel %vm1159, %v1039, %v1158
        %vm1161 = vcmask 1043459
        %v1162 = vsel %vm1161, %v1048, %v1160
        %vm1163 = vcmask 1044484
        %v1164 = vsel %vm1163, %v1057, %v1162
        %vm1165 = vcmask 1045509
        %v1166 = vsel %vm1165, %v1066, %v1164
        %vm1167 = vcmask 1046534
        %v1168 = vsel %vm1167, %v1075, %v1166
        %vm1169 = vcmask 1047559
        %v1170 = vsel %vm1169, %v1084, %v1168
        %v1171 = vsel %vm1157, %v1102, %v1093
        %v1172 = vsel %vm1159, %v1111, %v1171
        %v1173 = vsel %vm1161, %v1120, %v1172
        %v1174 = vsel %vm1163, %v1129, %v1173
        %v1175 = vsel %vm1165, %v1138, %v1174
        %v1176 = vsel %vm1167, %v1147, %v1175
        %v1177 = vsel %vm1169, %v1156, %v1176
        %v1210 = vlaneseq
        %v1211 = vshrl.u32 %v1210, 7
        %v1212 = vsub.s32 %v1010, %v1211
        %v1213 = vrot.slane %v914, %v1212
        %v1214 = vlaneseq
        %v1215 = vshrl.u32 %v1214, 7
        %v1216 = vsub.s32 %v1015, %v1215
        %v1217 = vrot.slane %v916, %v1216
        %v1218 = vsel %vm1020, %v1217, %v1213
        %v1219 = vlaneseq
        %v1220 = vshrl.u32 %v1219, 7
        %v1221 = vsub.s32 %v1010, %v1220
        %v1222 = vrot.slane %v918, %v1221
        %v1223 = vlaneseq
        %v1224 = vshrl.u32 %v1223, 7
        %v1225 = vsub.s32 %v1015, %v1224
        %v1226 = vrot.slane %v920, %v1225
        %v1227 = vsel %vm1020, %v1226, %v1222
        %v1228 = vlaneseq
        %v1229 = vshrl.u32 %v1228, 7
        %v1230 = vsub.s32 %v1010, %v1229
        %v1231 = vrot.slane %v922, %v1230
        %v1232 = vlaneseq
        %v1233 = vshrl.u32 %v1232, 7
        %v1234 = vsub.s32 %v1015, %v1233
        %v1235 = vrot.slane %v924, %v1234
        %v1236 = vsel %vm1020, %v1235, %v1231
        %v1237 = vlaneseq
        %v1238 = vshrl.u32 %v1237, 7
        %v1239 = vsub.s32 %v1010, %v1238
        %v1240 = vrot.slane %v926, %v1239
        %v1241 = vlaneseq
        %v1242 = vshrl.u32 %v1241, 7
        %v1243 = vsub.s32 %v1015, %v1242
        %v1244 = vrot.slane %v928, %v1243
        %v1245 = vsel %vm1020, %v1244, %v1240
        %v1246 = vlaneseq
        %v1247 = vshrl.u32 %v1246, 7
        %v1248 = vsub.s32 %v1010, %v1247
        %v1249 = vrot.slane %v930, %v1248
        %v1250 = vlaneseq
        %v1251 = vshrl.u32 %v1250, 7
        %v1252 = vsub.s32 %v1015, %v1251
        %v1253 = vrot.slane %v932, %v1252
        %v1254 = vsel %vm1020, %v1253, %v1249
        %v1255 = vlaneseq
        %v1256 = vshrl.u32 %v1255, 7
        %v1257 = vsub.s32 %v1010, %v1256
        %v1258 = vrot.slane %v934, %v1257
        %v1259 = vlaneseq
        %v1260 = vshrl.u32 %v1259, 7
        %v1261 = vsub.s32 %v1015, %v1260
        %v1262 = vrot.slane %v936, %v1261
        %v1263 = vsel %vm1020, %v1262, %v1258
        %v1264 = vlaneseq
        %v1265 = vshrl.u32 %v1264, 7
        %v1266 = vsub.s32 %v1010, %v1265
        %v1267 = vrot.slane %v938, %v1266
        %v1268 = vlaneseq
        %v1269 = vshrl.u32 %v1268, 7
        %v1270 = vsub.s32 %v1015, %v1269
        %v1271 = vrot.slane %v940, %v1270
        %v1272 = vsel %vm1020, %v1271, %v1267
        %v1273 = vlaneseq
        %v1274 = vshrl.u32 %v1273, 7
        %v1275 = vsub.s32 %v1010, %v1274
        %v1276 = vrot.slane %v942, %v1275
        %v1277 = vlaneseq
        %v1278 = vshrl.u32 %v1277, 7
        %v1279 = vsub.s32 %v1015, %v1278
        %v1280 = vrot.slane %v944, %v1279
        %v1281 = vsel %vm1020, %v1280, %v1276
        %v1282 = vlaneseq
        %v1283 = vshrl.u32 %v1282, 7
        %v1284 = vsub.s32 %v1010, %v1283
        %v1285 = vrot.slane %v946, %v1284
        %v1286 = vlaneseq
        %v1287 = vshrl.u32 %v1286, 7
        %v1288 = vsub.s32 %v1015, %v1287
        %v1289 = vrot.slane %v948, %v1288
        %v1290 = vsel %vm1020, %v1289, %v1285
        %v1291 = vlaneseq
        %v1292 = vshrl.u32 %v1291, 7
        %v1293 = vsub.s32 %v1010, %v1292
        %v1294 = vrot.slane %v950, %v1293
        %v1295 = vlaneseq
        %v1296 = vshrl.u32 %v1295, 7
        %v1297 = vsub.s32 %v1015, %v1296
        %v1298 = vrot.slane %v952, %v1297
        %v1299 = vsel %vm1020, %v1298, %v1294
        %v1300 = vlaneseq
        %v1301 = vshrl.u32 %v1300, 7
        %v1302 = vsub.s32 %v1010, %v1301
        %v1303 = vrot.slane %v954, %v1302
        %v1304 = vlaneseq
        %v1305 = vshrl.u32 %v1304, 7
        %v1306 = vsub.s32 %v1015, %v1305
        %v1307 = vrot.slane %v956, %v1306
        %v1308 = vsel %vm1020, %v1307, %v1303
        %v1309 = vlaneseq
        %v1310 = vshrl.u32 %v1309, 7
        %v1311 = vsub.s32 %v1010, %v1310
        %v1312 = vrot.slane %v958, %v1311
        %v1313 = vlaneseq
        %v1314 = vshrl.u32 %v1313, 7
        %v1315 = vsub.s32 %v1015, %v1314
        %v1316 = vrot.slane %v960, %v1315
        %v1317 = vsel %vm1020, %v1316, %v1312
        %v1318 = vlaneseq
        %v1319 = vshrl.u32 %v1318, 7
        %v1320 = vsub.s32 %v1010, %v1319
        %v1321 = vrot.slane %v962, %v1320
        %v1322 = vlaneseq
        %v1323 = vshrl.u32 %v1322, 7
        %v1324 = vsub.s32 %v1015, %v1323
        %v1325 = vrot.slane %v964, %v1324
        %v1326 = vsel %vm1020, %v1325, %v1321
        %v1327 = vlaneseq
        %v1328 = vshrl.u32 %v1327, 7
        %v1329 = vsub.s32 %v1010, %v1328
        %v1330 = vrot.slane %v966, %v1329
        %v1331 = vlaneseq
        %v1332 = vshrl.u32 %v1331, 7
        %v1333 = vsub.s32 %v1015, %v1332
        %v1334 = vrot.slane %v968, %v1333
        %v1335 = vsel %vm1020, %v1334, %v1330
        %v1336 = vlaneseq
        %v1337 = vshrl.u32 %v1336, 7
        %v1338 = vsub.s32 %v1010, %v1337
        %v1339 = vrot.slane %v970, %v1338
        %v1340 = vlaneseq
        %v1341 = vshrl.u32 %v1340, 7
        %v1342 = vsub.s32 %v1015, %v1341
        %v1343 = vrot.slane %v972, %v1342
        %v1344 = vsel %vm1020, %v1343, %v1339
        %v1345 = vlaneseq
        %v1346 = vshrl.u32 %v1345, 7
        %v1347 = vsub.s32 %v1010, %v1346
        %v1348 = vrot.slane %v974, %v1347
        %v1349 = vlaneseq
        %v1350 = vshrl.u32 %v1349, 7
        %v1351 = vsub.s32 %v1015, %v1350
        %v1352 = vrot.slane %v976, %v1351
        %v1353 = vsel %vm1020, %v1352, %v1348
        %v1354 = vsel %vm1157, %v1227, %v1218
        %v1355 = vsel %vm1159, %v1236, %v1354
        %v1356 = vsel %vm1161, %v1245, %v1355
        %v1357 = vsel %vm1163, %v1254, %v1356
        %v1358 = vsel %vm1165, %v1263, %v1357
        %v1359 = vsel %vm1167, %v1272, %v1358
        %v1360 = vsel %vm1169, %v1281, %v1359
        %v1361 = vsel %vm1157, %v1299, %v1290
        %v1362 = vsel %vm1159, %v1308, %v1361
        %v1363 = vsel %vm1161, %v1317, %v1362
        %v1364 = vsel %vm1163, %v1326, %v1363
        %v1365 = vsel %vm1165, %v1335, %v1364
        %v1366 = vsel %vm1167, %v1344, %v1365
        %v1367 = vsel %vm1169, %v1353, %v1366
        %v1368 = vld [vmem:[%s2] sm:$0x3]
        %1369 = vrot.lane.b32.xlu0 %v1170, 1
        %v1370 = vpop.permute.xlu0 %1369
        %1371 = vrot.lane.b32.xlu0 %v1177, 1
        %v1372 = vpop.permute.xlu0 %1371
        %1373 = vrot.lane.b32.xlu0 %v1360, 1
        %v1374 = vpop.permute.xlu0 %1373
        %1375 = vrot.lane.b32.xlu0 %v1367, 1
        %v1376 = vpop.permute.xlu0 %1375
        %v1381 = vsel %vm403, 0.0, %v1370
        %v1382 = vsel %vm403, 0.0, %v1372
        %v1383 = vsel %vm403, 0.0, %v1374
        %v1384 = vsel %vm403, 0.0, %v1376
        %v1385 = vsel %vm407, %v1381, 0.0
        %v1386 = vsel %vm407, %v1382, 0.0
        %v1387 = vsel %vm407, %v1383, 0.0
        %v1388 = vsel %vm407, %v1384, 0.0
        %1393 = vrot.lane.b32.xlu0 %v1385, 127
        %v1394 = vpop.permute.xlu0 %1393
        %1395 = vrot.lane.b32.xlu0 %v1386, 127
        %v1396 = vpop.permute.xlu0 %1395
        %1397 = vrot.lane.b32.xlu0 %v1387, 127
        %v1398 = vpop.permute.xlu0 %1397
        %1399 = vrot.lane.b32.xlu0 %v1388, 127
        %v1400 = vpop.permute.xlu0 %1399
        %1405 = vrot.lane.b32.xlu0 %v1385, 126
        %v1406 = vpop.permute.xlu0 %1405
        %1407 = vrot.lane.b32.xlu0 %v1386, 126
        %v1408 = vpop.permute.xlu0 %1407
        %1409 = vrot.lane.b32.xlu0 %v1387, 126
        %v1410 = vpop.permute.xlu0 %1409
        %1411 = vrot.lane.b32.xlu0 %v1388, 126
        %v1412 = vpop.permute.xlu0 %1411
        %vm1417 = vcmask 785408
        %v1419 = vsel %vm1417, %v1368, 0
        %1421 = vmatprep.subr.mxu0 0.0
        %1422 = vmatpush1.msra.mxu0 %v1385
        %1423 = vmatprep.subr.mxu0 0.0
        %1424 = vmatpush1.msra.mxu0 %v1386
        %1425 = vmatprep.subr.mxu0 0.0
        %1426 = vmatpush1.msra.mxu0 %v1387
        %1427 = vmatprep.subr.mxu0 0.0
        %1428 = vmatpush1.msra.mxu0 %v1388
        %1429 = vmatprep.subr.mxu0 0.0
        %1430 = vmatpush1.msra.mxu0 %v1394
        %1431 = vmatprep.subr.mxu0 0.0
        %1432 = vmatpush1.msra.mxu0 %v1396
        %1433 = vmatprep.subr.mxu0 0.0
        %1434 = vmatpush1.msra.mxu0 %v1398
        %1435 = vmatprep.subr.mxu0 0.0
        %1436 = vmatpush1.msra.mxu0 %v1400
        %1437 = vmatprep.subr.mxu0 0.0
        %1438 = vmatpush1.msra.mxu0 %v1406
        %1439 = vmatprep.subr.mxu0 0.0
        %1440 = vmatpush1.msra.mxu0 %v1408
        %1441 = vmatprep.subr.mxu0 0.0
        %1442 = vmatpush1.msra.mxu0 %v1410
        %1443 = vmatprep.subr.mxu0 0.0
        %1444 = vmatpush1.msra.mxu0 %v1412
        %1445 = vmatprep.subr.mxu0 0.0
        %1446 = vmatpush1.msra.mxu0 0.0
        %1447 = vmatprep.subr.mxu0 0.0
        %1448 = vmatpush1.msra.mxu0 0.0
        %1449 = vmatprep.subr.mxu0 0.0
        %1450 = vmatpush1.msra.mxu0 0.0
        %1451 = vmatprep.subr.mxu0 0.0
        %1452 = vmatpush1.msra.mxu0 0.0
        %1453 = vmatprep.subr.mxu0 0.0
        %1454 = vmatpush1.msra.mxu0 0.0
        %1455 = vmatprep.subr.mxu0 0.0
        %1456 = vmatpush1.msra.mxu0 0.0
        %1457 = vmatprep.subr.mxu0 0.0
        %1458 = vmatpush1.msra.mxu0 0.0
        %1459 = vmatprep.subr.mxu0 0.0
        %1460 = vmatpush1.msra.mxu0 0.0
        %1461 = vmatprep.subr.mxu0 0.0
        %1462 = vmatpush1.msra.mxu0 0.0
        %1463 = vmatprep.subr.mxu0 0.0
        %1464 = vmatpush1.msra.mxu0 0.0
        %1465 = vmatprep.subr.mxu0 0.0
        %1466 = vmatpush1.msra.mxu0 0.0
        %1467 = vmatprep.subr.mxu0 0.0
        %1468 = vmatpush1.msra.mxu0 0.0
        %1469 = vmatprep.subr.mxu0 0.0
        %1470 = vmatpush1.msra.mxu0 0.0
        %1471 = vmatprep.subr.mxu0 0.0
        %1472 = vmatpush1.msra.mxu0 0.0
        %1473 = vmatprep.subr.mxu0 0.0
        %1474 = vmatpush1.msra.mxu0 0.0
        %1475 = vmatprep.subr.mxu0 0.0
        %1476 = vmatpush1.msra.mxu0 0.0
        %1477 = vmatprep.subr.mxu0 0.0
        %1478 = vmatpush1.msra.mxu0 0.0
        %1479 = vmatprep.subr.mxu0 0.0
        %1480 = vmatpush1.msra.mxu0 0.0
        %1481 = vmatprep.subr.mxu0 0.0
        %1482 = vmatpush1.msra.mxu0 0.0
        %1483 = vmatprep.subr.mxu0 0.0
        %1484 = vmatpush1.msra.mxu0 0.0
        %1485 = vmatprep.mubr.f32.mxu0 0.0
        %1486 = vmatmul.mubr.f32.gmra.mrb[0].mxu0 %v1419
        %v1487 = vpop.f32.mrb[0].mxu0
        %v1488 = vadd.f32 0.0, %v1487
        %v1489 = vpop.f32.mrb[0].mxu0
        %1490 = vdwg.mxu0
        %v1491 = vmax.f32 %v1488, 0.0
        %v1492 = vld [vmem:[%s3] sm:$0xff]
        %v1493 = vld [vmem:[%s3 + $0x8] sm:$0xff]
        %1495 = vrot.lane.b32.xlu0 %v1491, 1
        %v1496 = vpop.permute.xlu0 %1495
        %v1498 = vsel %vm403, 0.0, %v1496
        %v1499 = vsel %vm407, %v1498, 0.0
        %v1501 = vrot.slane %v1499, 6
        %1502 = vrot.lane.b32.xlu0 %v1501, 127
        %v1503 = vpop.permute.xlu0 %1502
        %v1505 = vrot.slane %v1499, 4
        %1506 = vrot.lane.b32.xlu0 %v1505, 126
        %v1507 = vpop.permute.xlu0 %1506
        %vm1509 = vcmask 1041408
        %v1510 = vsel %vm1509, %v1499, %v1503
        %vm1511 = vcmask 1043456
        %v1512 = vsel %vm1511, %v1510, %v1507
        %vm1513 = vcmask 48128
        %v1515 = vsel %vm1513, %v1492, 0
        %v1518 = vsel %vm1513, %v1493, 0
        %v1521 = vsel %vm601, %v1512, 0
        %1523 = vmatprep.subr.mxu0 0.0
        %1524 = vmatpush1.msra.mxu0 %v1521
        %1525 = vmatprep.subr.mxu0 0.0
        %1526 = vmatpush1.msra.mxu0 0.0
        %1527 = vmatprep.subr.mxu0 0.0
        %1528 = vmatpush1.msra.mxu0 0.0
        %1529 = vmatprep.subr.mxu0 0.0
        %1530 = vmatpush1.msra.mxu0 0.0
        %1531 = vmatprep.subr.mxu0 0.0
        %1532 = vmatpush1.msra.mxu0 0.0
        %1533 = vmatprep.subr.mxu0 0.0
        %1534 = vmatpush1.msra.mxu0 0.0
        %1535 = vmatprep.subr.mxu0 0.0
        %1536 = vmatpush1.msra.mxu0 0.0
        %1537 = vmatprep.subr.mxu0 0.0
        %1538 = vmatpush1.msra.mxu0 0.0
        %1539 = vmatprep.subr.mxu0 0.0
        %1540 = vmatpush1.msra.mxu0 0.0
        %1541 = vmatprep.subr.mxu0 0.0
        %1542 = vmatpush1.msra.mxu0 0.0
        %1543 = vmatprep.subr.mxu0 0.0
        %1544 = vmatpush1.msra.mxu0 0.0
        %1545 = vmatprep.subr.mxu0 0.0
        %1546 = vmatpush1.msra.mxu0 0.0
        %1547 = vmatprep.subr.mxu0 0.0
        %1548 = vmatpush1.msra.mxu0 0.0
        %1549 = vmatprep.subr.mxu0 0.0
        %1550 = vmatpush1.msra.mxu0 0.0
        %1551 = vmatprep.subr.mxu0 0.0
        %1552 = vmatpush1.msra.mxu0 0.0
        %1553 = vmatprep.subr.mxu0 0.0
        %1554 = vmatpush1.msra.mxu0 0.0
        %1555 = vmatprep.subr.mxu0 0.0
        %1556 = vmatpush1.msra.mxu0 0.0
        %1557 = vmatprep.subr.mxu0 0.0
        %1558 = vmatpush1.msra.mxu0 0.0
        %1559 = vmatprep.subr.mxu0 0.0
        %1560 = vmatpush1.msra.mxu0 0.0
        %1561 = vmatprep.subr.mxu0 0.0
        %1562 = vmatpush1.msra.mxu0 0.0
        %1563 = vmatprep.subr.mxu0 0.0
        %1564 = vmatpush1.msra.mxu0 0.0
        %1565 = vmatprep.subr.mxu0 0.0
        %1566 = vmatpush1.msra.mxu0 0.0
        %1567 = vmatprep.subr.mxu0 0.0
        %1568 = vmatpush1.msra.mxu0 0.0
        %1569 = vmatprep.subr.mxu0 0.0
        %1570 = vmatpush1.msra.mxu0 0.0
        %1571 = vmatprep.subr.mxu0 0.0
        %1572 = vmatpush1.msra.mxu0 0.0
        %1573 = vmatprep.subr.mxu0 0.0
        %1574 = vmatpush1.msra.mxu0 0.0
        %1575 = vmatprep.subr.mxu0 0.0
        %1576 = vmatpush1.msra.mxu0 0.0
        %1577 = vmatprep.subr.mxu0 0.0
        %1578 = vmatpush1.msra.mxu0 0.0
        %1579 = vmatprep.subr.mxu0 0.0
        %1580 = vmatpush1.msra.mxu0 0.0
        %1581 = vmatprep.subr.mxu0 0.0
        %1582 = vmatpush1.msra.mxu0 0.0
        %1583 = vmatprep.subr.mxu0 0.0
        %1584 = vmatpush1.msra.mxu0 0.0
        %1585 = vmatprep.subr.mxu0 0.0
        %1586 = vmatpush1.msra.mxu0 0.0
        %1587 = vmatprep.mubr.f32.mxu0 0.0
        %1588 = vmatmul.mubr.f32.gmra.mrb[0].mxu0 %v1515
        %v1589 = vpop.f32.mrb[0].mxu0
        %v1590 = vadd.f32 0.0, %v1589
        %v1591 = vpop.f32.mrb[0].mxu0
        %1592 = vmatprep.mubr.f32.mxu0 0.0
        %1593 = vmatmul.mubr.f32.gmra.mrb[0].mxu0 %v1518
        %v1594 = vpop.f32.mrb[0].mxu0
        %v1595 = vadd.f32 0.0, %v1594
        %v1596 = vpop.f32.mrb[0].mxu0
        %1597 = vdwg.mxu0
        %v1598 = vxor.u32 %v1590, 2147483648
        %v1599 = vxor.u32 %v1595, 2147483648
        %v1600 = vmul.f32 %v1598, 1.442695
        %v1601 = vpow.pop %v1600
        %v1602 = vmul.f32 %v1599, 1.442695
        %v1603 = vpow.pop %v1602
        %v1604 = vadd.f32 %v1601, 1.0
        %v1605 = vadd.f32 %v1603, 1.0
        %v1606 = vrcp.pop %v1604
        %v1607 = vmul.f32 1.0, %v1606
        %v1608 = vrcp.pop %v1605
        %v1609 = vmul.f32 1.0, %v1608
        %v1610 = vadd.f32 %v317, %v348
        %v1611 = vrot.slane %v1610, 4
        %v1612 = vadd.f32 %v1610, %v1611
        %v1613 = vrot.slane %v1612, 2
        %v1614 = vadd.f32 %v1612, %v1613
        %v1615 = vrot.slane %v1614, 1
        %v1616 = vadd.f32 %v1614, %v1615
        %v1617 = vadd.f32 %v318, %v349
        %v1618 = vrot.slane %v1617, 4
        %v1619 = vadd.f32 %v1617, %v1618
        %v1620 = vrot.slane %v1619, 2
        %v1621 = vadd.f32 %v1619, %v1620
        %v1622 = vrot.slane %v1621, 1
        %v1623 = vadd.f32 %v1621, %v1622
        %v1624 = vadd.f32 %v320, %v351
        %v1625 = vrot.slane %v1624, 4
        %v1626 = vadd.f32 %v1624, %v1625
        %v1627 = vrot.slane %v1626, 2
        %v1628 = vadd.f32 %v1626, %v1627
        %v1629 = vrot.slane %v1628, 1
        %v1630 = vadd.f32 %v1628, %v1629
        %v1631 = vadd.f32 %v322, %v353
        %v1632 = vrot.slane %v1631, 4
        %v1633 = vadd.f32 %v1631, %v1632
        %v1634 = vrot.slane %v1633, 2
        %v1635 = vadd.f32 %v1633, %v1634
        %v1636 = vrot.slane %v1635, 1
        %v1637 = vadd.f32 %v1635, %v1636
        %v1638 = vadd.f32 %v324, %v355
        %v1639 = vrot.slane %v1638, 4
        %v1640 = vadd.f32 %v1638, %v1639
        %v1641 = vrot.slane %v1640, 2
        %v1642 = vadd.f32 %v1640, %v1641
        %v1643 = vrot.slane %v1642, 1
        %v1644 = vadd.f32 %v1642, %v1643
        %v1645 = vadd.f32 %v326, %v357
        %v1646 = vrot.slane %v1645, 4
        %v1647 = vadd.f32 %v1645, %v1646
        %v1648 = vrot.slane %v1647, 2
        %v1649 = vadd.f32 %v1647, %v1648
        %v1650 = vrot.slane %v1649, 1
        %v1651 = vadd.f32 %v1649, %v1650
        %v1652 = vadd.f32 %v328, %v359
        %v1653 = vrot.slane %v1652, 4
        %v1654 = vadd.f32 %v1652, %v1653
        %v1655 = vrot.slane %v1654, 2
        %v1656 = vadd.f32 %v1654, %v1655
        %v1657 = vrot.slane %v1656, 1
        %v1658 = vadd.f32 %v1656, %v1657
        %v1659 = vadd.f32 %v330, %v361
        %v1660 = vrot.slane %v1659, 4
        %v1661 = vadd.f32 %v1659, %v1660
        %v1662 = vrot.slane %v1661, 2
        %v1663 = vadd.f32 %v1661, %v1662
        %v1664 = vrot.slane %v1663, 1
        %v1665 = vadd.f32 %v1663, %v1664
        %v1666 = vadd.f32 %v332, %v363
        %v1667 = vrot.slane %v1666, 4
        %v1668 = vadd.f32 %v1666, %v1667
        %v1669 = vrot.slane %v1668, 2
        %v1670 = vadd.f32 %v1668, %v1669
        %v1671 = vrot.slane %v1670, 1
        %v1672 = vadd.f32 %v1670, %v1671
        %v1673 = vadd.f32 %v334, %v365
        %v1674 = vrot.slane %v1673, 4
        %v1675 = vadd.f32 %v1673, %v1674
        %v1676 = vrot.slane %v1675, 2
        %v1677 = vadd.f32 %v1675, %v1676
        %v1678 = vrot.slane %v1677, 1
        %v1679 = vadd.f32 %v1677, %v1678
        %v1680 = vadd.f32 %v336, %v367
        %v1681 = vrot.slane %v1680, 4
        %v1682 = vadd.f32 %v1680, %v1681
        %v1683 = vrot.slane %v1682, 2
        %v1684 = vadd.f32 %v1682, %v1683
        %v1685 = vrot.slane %v1684, 1
        %v1686 = vadd.f32 %v1684, %v1685
        %v1687 = vadd.f32 %v338, %v369
        %v1688 = vrot.slane %v1687, 4
        %v1689 = vadd.f32 %v1687, %v1688
        %v1690 = vrot.slane %v1689, 2
        %v1691 = vadd.f32 %v1689, %v1690
        %v1692 = vrot.slane %v1691, 1
        %v1693 = vadd.f32 %v1691, %v1692
        %v1694 = vadd.f32 %v340, %v371
        %v1695 = vrot.slane %v1694, 4
        %v1696 = vadd.f32 %v1694, %v1695
        %v1697 = vrot.slane %v1696, 2
        %v1698 = vadd.f32 %v1696, %v1697
        %v1699 = vrot.slane %v1698, 1
        %v1700 = vadd.f32 %v1698, %v1699
        %v1701 = vadd.f32 %v342, %v373
        %v1702 = vrot.slane %v1701, 4
        %v1703 = vadd.f32 %v1701, %v1702
        %v1704 = vrot.slane %v1703, 2
        %v1705 = vadd.f32 %v1703, %v1704
        %v1706 = vrot.slane %v1705, 1
        %v1707 = vadd.f32 %v1705, %v1706
        %v1708 = vadd.f32 %v344, %v375
        %v1709 = vrot.slane %v1708, 4
        %v1710 = vadd.f32 %v1708, %v1709
        %v1711 = vrot.slane %v1710, 2
        %v1712 = vadd.f32 %v1710, %v1711
        %v1713 = vrot.slane %v1712, 1
        %v1714 = vadd.f32 %v1712, %v1713
        %v1715 = vadd.f32 %v346, %v377
        %v1716 = vrot.slane %v1715, 4
        %v1717 = vadd.f32 %v1715, %v1716
        %v1718 = vrot.slane %v1717, 2
        %v1719 = vadd.f32 %v1717, %v1718
        %v1720 = vrot.slane %v1719, 1
        %v1721 = vadd.f32 %v1719, %v1720
        %v1722 = vmul.f32 %v1616, %v379
        %v1723 = vmul.f32 %v1623, %v379
        %v1724 = vmul.f32 %v1630, %v379
        %v1725 = vmul.f32 %v1637, %v379
        %v1726 = vmul.f32 %v1644, %v379
        %v1727 = vmul.f32 %v1651, %v379
        %v1728 = vmul.f32 %v1658, %v379
        %v1729 = vmul.f32 %v1665, %v379
        %v1730 = vmul.f32 %v1672, %v379
        %v1731 = vmul.f32 %v1679, %v379
        %v1732 = vmul.f32 %v1686, %v379
        %v1733 = vmul.f32 %v1693, %v379
        %v1734 = vmul.f32 %v1700, %v379
        %v1735 = vmul.f32 %v1707, %v379
        %v1736 = vmul.f32 %v1714, %v379
        %v1737 = vmul.f32 %v1721, %v379
        %v1738 = vmax.f32 %v411, %v442
        %v1739 = vrot.slane %v1738, 4
        %v1740 = vmax.f32 %v1738, %v1739
        %v1741 = vrot.slane %v1740, 2
        %v1742 = vmax.f32 %v1740, %v1741
        %v1743 = vrot.slane %v1742, 1
        %v1744 = vmax.f32 %v1742, %v1743
        %v1745 = vmax.f32 %v412, %v443
        %v1746 = vrot.slane %v1745, 4
        %v1747 = vmax.f32 %v1745, %v1746
        %v1748 = vrot.slane %v1747, 2
        %v1749 = vmax.f32 %v1747, %v1748
        %v1750 = vrot.slane %v1749, 1
        %v1751 = vmax.f32 %v1749, %v1750
        %v1752 = vmax.f32 %v413, %v444
        %v1753 = vrot.slane %v1752, 4
        %v1754 = vmax.f32 %v1752, %v1753
        %v1755 = vrot.slane %v1754, 2
        %v1756 = vmax.f32 %v1754, %v1755
        %v1757 = vrot.slane %v1756, 1
        %v1758 = vmax.f32 %v1756, %v1757
        %v1759 = vmax.f32 %v415, %v446
        %v1760 = vrot.slane %v1759, 4
        %v1761 = vmax.f32 %v1759, %v1760
        %v1762 = vrot.slane %v1761, 2
        %v1763 = vmax.f32 %v1761, %v1762
        %v1764 = vrot.slane %v1763, 1
        %v1765 = vmax.f32 %v1763, %v1764
        %v1766 = vmax.f32 %v417, %v448
        %v1767 = vrot.slane %v1766, 4
        %v1768 = vmax.f32 %v1766, %v1767
        %v1769 = vrot.slane %v1768, 2
        %v1770 = vmax.f32 %v1768, %v1769
        %v1771 = vrot.slane %v1770, 1
        %v1772 = vmax.f32 %v1770, %v1771
        %v1773 = vmax.f32 %v419, %v450
        %v1774 = vrot.slane %v1773, 4
        %v1775 = vmax.f32 %v1773, %v1774
        %v1776 = vrot.slane %v1775, 2
        %v1777 = vmax.f32 %v1775, %v1776
        %v1778 = vrot.slane %v1777, 1
        %v1779 = vmax.f32 %v1777, %v1778
        %v1780 = vmax.f32 %v421, %v452
        %v1781 = vrot.slane %v1780, 4
        %v1782 = vmax.f32 %v1780, %v1781
        %v1783 = vrot.slane %v1782, 2
        %v1784 = vmax.f32 %v1782, %v1783
        %v1785 = vrot.slane %v1784, 1
        %v1786 = vmax.f32 %v1784, %v1785
        %v1787 = vmax.f32 %v423, %v454
        %v1788 = vrot.slane %v1787, 4
        %v1789 = vmax.f32 %v1787, %v1788
        %v1790 = vrot.slane %v1789, 2
        %v1791 = vmax.f32 %v1789, %v1790
        %v1792 = vrot.slane %v1791, 1
        %v1793 = vmax.f32 %v1791, %v1792
        %v1794 = vmax.f32 %v425, %v456
        %v1795 = vrot.slane %v1794, 4
        %v1796 = vmax.f32 %v1794, %v1795
        %v1797 = vrot.slane %v1796, 2
        %v1798 = vmax.f32 %v1796, %v1797
        %v1799 = vrot.slane %v1798, 1
        %v1800 = vmax.f32 %v1798, %v1799
        %v1801 = vmax.f32 %v427, %v458
        %v1802 = vrot.slane %v1801, 4
        %v1803 = vmax.f32 %v1801, %v1802
        %v1804 = vrot.slane %v1803, 2
        %v1805 = vmax.f32 %v1803, %v1804
        %v1806 = vrot.slane %v1805, 1
        %v1807 = vmax.f32 %v1805, %v1806
        %v1808 = vmax.f32 %v429, %v460
        %v1809 = vrot.slane %v1808, 4
        %v1810 = vmax.f32 %v1808, %v1809
        %v1811 = vrot.slane %v1810, 2
        %v1812 = vmax.f32 %v1810, %v1811
        %v1813 = vrot.slane %v1812, 1
        %v1814 = vmax.f32 %v1812, %v1813
        %v1815 = vmax.f32 %v431, %v462
        %v1816 = vrot.slane %v1815, 4
        %v1817 = vmax.f32 %v1815, %v1816
        %v1818 = vrot.slane %v1817, 2
        %v1819 = vmax.f32 %v1817, %v1818
        %v1820 = vrot.slane %v1819, 1
        %v1821 = vmax.f32 %v1819, %v1820
        %v1822 = vmax.f32 %v433, %v464
        %v1823 = vrot.slane %v1822, 4
        %v1824 = vmax.f32 %v1822, %v1823
        %v1825 = vrot.slane %v1824, 2
        %v1826 = vmax.f32 %v1824, %v1825
        %v1827 = vrot.slane %v1826, 1
        %v1828 = vmax.f32 %v1826, %v1827
        %v1829 = vmax.f32 %v435, %v466
        %v1830 = vrot.slane %v1829, 4
        %v1831 = vmax.f32 %v1829, %v1830
        %v1832 = vrot.slane %v1831, 2
        %v1833 = vmax.f32 %v1831, %v1832
        %v1834 = vrot.slane %v1833, 1
        %v1835 = vmax.f32 %v1833, %v1834
        %v1836 = vmax.f32 %v437, %v468
        %v1837 = vrot.slane %v1836, 4
        %v1838 = vmax.f32 %v1836, %v1837
        %v1839 = vrot.slane %v1838, 2
        %v1840 = vmax.f32 %v1838, %v1839
        %v1841 = vrot.slane %v1840, 1
        %v1842 = vmax.f32 %v1840, %v1841
        %v1843 = vmax.f32 %v439, %v470
        %v1844 = vrot.slane %v1843, 4
        %v1845 = vmax.f32 %v1843, %v1844
        %v1846 = vrot.slane %v1845, 2
        %v1847 = vmax.f32 %v1845, %v1846
        %v1848 = vrot.slane %v1847, 1
        %v1849 = vmax.f32 %v1847, %v1848
        %v1866 = vsel %vm1157, %v1723, %v1722
        %v1867 = vsel %vm1159, %v1724, %v1866
        %v1868 = vsel %vm1161, %v1725, %v1867
        %v1869 = vsel %vm1163, %v1726, %v1868
        %v1870 = vsel %vm1165, %v1727, %v1869
        %v1871 = vsel %vm1167, %v1728, %v1870
        %v1872 = vsel %vm1169, %v1729, %v1871
        %v1873 = vsel %vm1157, %v1731, %v1730
        %v1874 = vsel %vm1159, %v1732, %v1873
        %v1875 = vsel %vm1161, %v1733, %v1874
        %v1876 = vsel %vm1163, %v1734, %v1875
        %v1877 = vsel %vm1165, %v1735, %v1876
        %v1878 = vsel %vm1167, %v1736, %v1877
        %v1879 = vsel %vm1169, %v1737, %v1878
        %v1896 = vsel %vm1157, %v1751, %v1744
        %v1897 = vsel %vm1159, %v1758, %v1896
        %v1898 = vsel %vm1161, %v1765, %v1897
        %v1899 = vsel %vm1163, %v1772, %v1898
        %v1900 = vsel %vm1165, %v1779, %v1899
        %v1901 = vsel %vm1167, %v1786, %v1900
        %v1902 = vsel %vm1169, %v1793, %v1901
        %v1903 = vsel %vm1157, %v1807, %v1800
        %v1904 = vsel %vm1159, %v1814, %v1903
        %v1905 = vsel %vm1161, %v1821, %v1904
        %v1906 = vsel %vm1163, %v1828, %v1905
        %v1907 = vsel %vm1165, %v1835, %v1906
        %v1908 = vsel %vm1167, %v1842, %v1907
        %v1909 = vsel %vm1169, %v1849, %v1908
        %v1910 = vld [vmem:[%s4] sm:$0x3]
        %1911 = vrot.lane.b32.xlu0 %v1872, 1
        %v1912 = vpop.permute.xlu0 %1911
        %1913 = vrot.lane.b32.xlu0 %v1879, 1
        %v1914 = vpop.permute.xlu0 %1913
        %1915 = vrot.lane.b32.xlu0 %v1902, 1
        %v1916 = vpop.permute.xlu0 %1915
        %1917 = vrot.lane.b32.xlu0 %v1909, 1
        %v1918 = vpop.permute.xlu0 %1917
        %v1923 = vsel %vm403, 0.0, %v1912
        %v1924 = vsel %vm403, 0.0, %v1914
        %v1925 = vsel %vm403, 0.0, %v1916
        %v1926 = vsel %vm403, 0.0, %v1918
        %v1927 = vsel %vm407, %v1923, 0.0
        %v1928 = vsel %vm407, %v1924, 0.0
        %v1929 = vsel %vm407, %v1925, 0.0
        %v1930 = vsel %vm407, %v1926, 0.0
        %1935 = vrot.lane.b32.xlu0 %v1927, 127
        %v1936 = vpop.permute.xlu0 %1935
        %1937 = vrot.lane.b32.xlu0 %v1928, 127
        %v1938 = vpop.permute.xlu0 %1937
        %1939 = vrot.lane.b32.xlu0 %v1929, 127
        %v1940 = vpop.permute.xlu0 %1939
        %1941 = vrot.lane.b32.xlu0 %v1930, 127
        %v1942 = vpop.permute.xlu0 %1941
        %1947 = vrot.lane.b32.xlu0 %v1927, 126
        %v1948 = vpop.permute.xlu0 %1947
        %1949 = vrot.lane.b32.xlu0 %v1928, 126
        %v1950 = vpop.permute.xlu0 %1949
        %1951 = vrot.lane.b32.xlu0 %v1929, 126
        %v1952 = vpop.permute.xlu0 %1951
        %1953 = vrot.lane.b32.xlu0 %v1930, 126
        %v1954 = vpop.permute.xlu0 %1953
        %v1960 = vsel %vm1417, %v1910, 0
        %1962 = vmatprep.subr.mxu0 0.0
        %1963 = vmatpush1.msra.mxu0 %v1927
        %1964 = vmatprep.subr.mxu0 0.0
        %1965 = vmatpush1.msra.mxu0 %v1928
        %1966 = vmatprep.subr.mxu0 0.0
        %1967 = vmatpush1.msra.mxu0 %v1929
        %1968 = vmatprep.subr.mxu0 0.0
        %1969 = vmatpush1.msra.mxu0 %v1930
        %1970 = vmatprep.subr.mxu0 0.0
        %1971 = vmatpush1.msra.mxu0 %v1936
        %1972 = vmatprep.subr.mxu0 0.0
        %1973 = vmatpush1.msra.mxu0 %v1938
        %1974 = vmatprep.subr.mxu0 0.0
        %1975 = vmatpush1.msra.mxu0 %v1940
        %1976 = vmatprep.subr.mxu0 0.0
        %1977 = vmatpush1.msra.mxu0 %v1942
        %1978 = vmatprep.subr.mxu0 0.0
        %1979 = vmatpush1.msra.mxu0 %v1948
        %1980 = vmatprep.subr.mxu0 0.0
        %1981 = vmatpush1.msra.mxu0 %v1950
        %1982 = vmatprep.subr.mxu0 0.0
        %1983 = vmatpush1.msra.mxu0 %v1952
        %1984 = vmatprep.subr.mxu0 0.0
        %1985 = vmatpush1.msra.mxu0 %v1954
        %1986 = vmatprep.subr.mxu0 0.0
        %1987 = vmatpush1.msra.mxu0 0.0
        %1988 = vmatprep.subr.mxu0 0.0
        %1989 = vmatpush1.msra.mxu0 0.0
        %1990 = vmatprep.subr.mxu0 0.0
        %1991 = vmatpush1.msra.mxu0 0.0
        %1992 = vmatprep.subr.mxu0 0.0
        %1993 = vmatpush1.msra.mxu0 0.0
        %1994 = vmatprep.subr.mxu0 0.0
        %1995 = vmatpush1.msra.mxu0 0.0
        %1996 = vmatprep.subr.mxu0 0.0
        %1997 = vmatpush1.msra.mxu0 0.0
        %1998 = vmatprep.subr.mxu0 0.0
        %1999 = vmatpush1.msra.mxu0 0.0
        %2000 = vmatprep.subr.mxu0 0.0
        %2001 = vmatpush1.msra.mxu0 0.0
        %2002 = vmatprep.subr.mxu0 0.0
        %2003 = vmatpush1.msra.mxu0 0.0
        %2004 = vmatprep.subr.mxu0 0.0
        %2005 = vmatpush1.msra.mxu0 0.0
        %2006 = vmatprep.subr.mxu0 0.0
        %2007 = vmatpush1.msra.mxu0 0.0
        %2008 = vmatprep.subr.mxu0 0.0
        %2009 = vmatpush1.msra.mxu0 0.0
        %2010 = vmatprep.subr.mxu0 0.0
        %2011 = vmatpush1.msra.mxu0 0.0
        %2012 = vmatprep.subr.mxu0 0.0
        %2013 = vmatpush1.msra.mxu0 0.0
        %2014 = vmatprep.subr.mxu0 0.0
        %2015 = vmatpush1.msra.mxu0 0.0
        %2016 = vmatprep.subr.mxu0 0.0
        %2017 = vmatpush1.msra.mxu0 0.0
        %2018 = vmatprep.subr.mxu0 0.0
        %2019 = vmatpush1.msra.mxu0 0.0
        %2020 = vmatprep.subr.mxu0 0.0
        %2021 = vmatpush1.msra.mxu0 0.0
        %2022 = vmatprep.subr.mxu0 0.0
        %2023 = vmatpush1.msra.mxu0 0.0
        %2024 = vmatprep.subr.mxu0 0.0
        %2025 = vmatpush1.msra.mxu0 0.0
        %2026 = vmatprep.mubr.f32.mxu0 0.0
        %2027 = vmatmul.mubr.f32.gmra.mrb[0].mxu0 %v1960
        %v2028 = vpop.f32.mrb[0].mxu0
        %v2029 = vadd.f32 0.0, %v2028
        %v2030 = vpop.f32.mrb[0].mxu0
        %2031 = vdwg.mxu0
        %v2032 = vmax.f32 %v2029, 0.0
        %v2033 = vld [vmem:[%s5] sm:$0xff]
        %v2034 = vld [vmem:[%s5 + $0x8] sm:$0xff]
        %2036 = vrot.lane.b32.xlu0 %v2032, 1
        %v2037 = vpop.permute.xlu0 %2036
        %v2039 = vsel %vm403, 0.0, %v2037
        %v2040 = vsel %vm407, %v2039, 0.0
        %v2042 = vrot.slane %v2040, 6
        %2043 = vrot.lane.b32.xlu0 %v2042, 127
        %v2044 = vpop.permute.xlu0 %2043
        %v2046 = vrot.slane %v2040, 4
        %2047 = vrot.lane.b32.xlu0 %v2046, 126
        %v2048 = vpop.permute.xlu0 %2047
        %v2050 = vsel %vm1509, %v2040, %v2044
        %v2051 = vsel %vm1511, %v2050, %v2048
        %v2053 = vsel %vm1513, %v2033, 0
        %v2056 = vsel %vm1513, %v2034, 0
        %v2059 = vsel %vm601, %v2051, 0
        %2061 = vmatprep.subr.mxu0 0.0
        %2062 = vmatpush1.msra.mxu0 %v2059
        %2063 = vmatprep.subr.mxu0 0.0
        %2064 = vmatpush1.msra.mxu0 0.0
        %2065 = vmatprep.subr.mxu0 0.0
        %2066 = vmatpush1.msra.mxu0 0.0
        %2067 = vmatprep.subr.mxu0 0.0
        %2068 = vmatpush1.msra.mxu0 0.0
        %2069 = vmatprep.subr.mxu0 0.0
        %2070 = vmatpush1.msra.mxu0 0.0
        %2071 = vmatprep.subr.mxu0 0.0
        %2072 = vmatpush1.msra.mxu0 0.0
        %2073 = vmatprep.subr.mxu0 0.0
        %2074 = vmatpush1.msra.mxu0 0.0
        %2075 = vmatprep.subr.mxu0 0.0
        %2076 = vmatpush1.msra.mxu0 0.0
        %2077 = vmatprep.subr.mxu0 0.0
        %2078 = vmatpush1.msra.mxu0 0.0
        %2079 = vmatprep.subr.mxu0 0.0
        %2080 = vmatpush1.msra.mxu0 0.0
        %2081 = vmatprep.subr.mxu0 0.0
        %2082 = vmatpush1.msra.mxu0 0.0
        %2083 = vmatprep.subr.mxu0 0.0
        %2084 = vmatpush1.msra.mxu0 0.0
        %2085 = vmatprep.subr.mxu0 0.0
        %2086 = vmatpush1.msra.mxu0 0.0
        %2087 = vmatprep.subr.mxu0 0.0
        %2088 = vmatpush1.msra.mxu0 0.0
        %2089 = vmatprep.subr.mxu0 0.0
        %2090 = vmatpush1.msra.mxu0 0.0
        %2091 = vmatprep.subr.mxu0 0.0
        %2092 = vmatpush1.msra.mxu0 0.0
        %2093 = vmatprep.subr.mxu0 0.0
        %2094 = vmatpush1.msra.mxu0 0.0
        %2095 = vmatprep.subr.mxu0 0.0
        %2096 = vmatpush1.msra.mxu0 0.0
        %2097 = vmatprep.subr.mxu0 0.0
        %2098 = vmatpush1.msra.mxu0 0.0
        %2099 = vmatprep.subr.mxu0 0.0
        %2100 = vmatpush1.msra.mxu0 0.0
        %2101 = vmatprep.subr.mxu0 0.0
        %2102 = vmatpush1.msra.mxu0 0.0
        %2103 = vmatprep.subr.mxu0 0.0
        %2104 = vmatpush1.msra.mxu0 0.0
        %2105 = vmatprep.subr.mxu0 0.0
        %2106 = vmatpush1.msra.mxu0 0.0
        %2107 = vmatprep.subr.mxu0 0.0
        %2108 = vmatpush1.msra.mxu0 0.0
        %2109 = vmatprep.subr.mxu0 0.0
        %2110 = vmatpush1.msra.mxu0 0.0
        %2111 = vmatprep.subr.mxu0 0.0
        %2112 = vmatpush1.msra.mxu0 0.0
        %2113 = vmatprep.subr.mxu0 0.0
        %2114 = vmatpush1.msra.mxu0 0.0
        %2115 = vmatprep.subr.mxu0 0.0
        %2116 = vmatpush1.msra.mxu0 0.0
        %2117 = vmatprep.subr.mxu0 0.0
        %2118 = vmatpush1.msra.mxu0 0.0
        %2119 = vmatprep.subr.mxu0 0.0
        %2120 = vmatpush1.msra.mxu0 0.0
        %2121 = vmatprep.subr.mxu0 0.0
        %2122 = vmatpush1.msra.mxu0 0.0
        %2123 = vmatprep.subr.mxu0 0.0
        %2124 = vmatpush1.msra.mxu0 0.0
        %2125 = vmatprep.mubr.f32.mxu0 0.0
        %2126 = vmatmul.mubr.f32.gmra.mrb[0].mxu0 %v2053
        %v2127 = vpop.f32.mrb[0].mxu0
        %v2128 = vadd.f32 0.0, %v2127
        %v2129 = vpop.f32.mrb[0].mxu0
        %2130 = vmatprep.mubr.f32.mxu0 0.0
        %2131 = vmatmul.mubr.f32.gmra.mrb[0].mxu0 %v2056
        %v2132 = vpop.f32.mrb[0].mxu0
        %v2133 = vadd.f32 0.0, %v2132
        %v2134 = vpop.f32.mrb[0].mxu0
        %2135 = vdwg.mxu0
        %v2136 = vxor.u32 %v2128, 2147483648
        %v2137 = vxor.u32 %v2133, 2147483648
        %v2138 = vmul.f32 %v2136, 1.442695
        %v2139 = vpow.pop %v2138
        %v2140 = vmul.f32 %v2137, 1.442695
        %v2141 = vpow.pop %v2140
        %v2142 = vadd.f32 %v2139, 1.0
        %v2143 = vadd.f32 %v2141, 1.0
        %v2144 = vrcp.pop %v2142
        %v2145 = vmul.f32 1.0, %v2144
        %v2146 = vrcp.pop %v2143
        %v2147 = vmul.f32 1.0, %v2146
        %v2148 = vlaneseq
        %v2149 = vshrl.u32 %v2148, 7
        %v2150 = vsub.s32 0, %v2149
        %v2151 = vrot.slane %v1607, %v2150
        %2153 = vbcast.lane.b32.xlu0 %v2151, 256
        %v2154 = vpop.permute.xlu0 %2153
        %s2156 = sor.u32 256, 8
        %2157 = vbcast.lane.b32.xlu0 %v2151, %s2156
        %v2158 = vpop.permute.xlu0 %2157
        %v2159 = vlaneseq
        %v2160 = vshrl.u32 %v2159, 7
        %v2161 = vsub.s32 1, %v2160
        %v2162 = vrot.slane %v1607, %v2161
        %2164 = vbcast.lane.b32.xlu0 %v2162, 256
        %v2165 = vpop.permute.xlu0 %2164
        %s2167 = sor.u32 256, 8
        %2168 = vbcast.lane.b32.xlu0 %v2162, %s2167
        %v2169 = vpop.permute.xlu0 %2168
        %v2170 = vlaneseq
        %v2171 = vshrl.u32 %v2170, 7
        %v2172 = vsub.s32 2, %v2171
        %v2173 = vrot.slane %v1607, %v2172
        %2175 = vbcast.lane.b32.xlu0 %v2173, 256
        %v2176 = vpop.permute.xlu0 %2175
        %s2178 = sor.u32 256, 8
        %2179 = vbcast.lane.b32.xlu0 %v2173, %s2178
        %v2180 = vpop.permute.xlu0 %2179
        %v2181 = vlaneseq
        %v2182 = vshrl.u32 %v2181, 7
        %v2183 = vsub.s32 3, %v2182
        %v2184 = vrot.slane %v1607, %v2183
        %2186 = vbcast.lane.b32.xlu0 %v2184, 256
        %v2187 = vpop.permute.xlu0 %2186
        %s2189 = sor.u32 256, 8
        %2190 = vbcast.lane.b32.xlu0 %v2184, %s2189
        %v2191 = vpop.permute.xlu0 %2190
        %v2192 = vlaneseq
        %v2193 = vshrl.u32 %v2192, 7
        %v2194 = vsub.s32 4, %v2193
        %v2195 = vrot.slane %v1607, %v2194
        %2197 = vbcast.lane.b32.xlu0 %v2195, 256
        %v2198 = vpop.permute.xlu0 %2197
        %s2200 = sor.u32 256, 8
        %2201 = vbcast.lane.b32.xlu0 %v2195, %s2200
        %v2202 = vpop.permute.xlu0 %2201
        %v2203 = vlaneseq
        %v2204 = vshrl.u32 %v2203, 7
        %v2205 = vsub.s32 5, %v2204
        %v2206 = vrot.slane %v1607, %v2205
        %2208 = vbcast.lane.b32.xlu0 %v2206, 256
        %v2209 = vpop.permute.xlu0 %2208
        %s2211 = sor.u32 256, 8
        %2212 = vbcast.lane.b32.xlu0 %v2206, %s2211
        %v2213 = vpop.permute.xlu0 %2212
        %v2214 = vlaneseq
        %v2215 = vshrl.u32 %v2214, 7
        %v2216 = vsub.s32 6, %v2215
        %v2217 = vrot.slane %v1607, %v2216
        %2219 = vbcast.lane.b32.xlu0 %v2217, 256
        %v2220 = vpop.permute.xlu0 %2219
        %s2222 = sor.u32 256, 8
        %2223 = vbcast.lane.b32.xlu0 %v2217, %s2222
        %v2224 = vpop.permute.xlu0 %2223
        %v2225 = vlaneseq
        %v2226 = vshrl.u32 %v2225, 7
        %v2227 = vsub.s32 7, %v2226
        %v2228 = vrot.slane %v1607, %v2227
        %2230 = vbcast.lane.b32.xlu0 %v2228, 256
        %v2231 = vpop.permute.xlu0 %2230
        %s2233 = sor.u32 256, 8
        %2234 = vbcast.lane.b32.xlu0 %v2228, %s2233
        %v2235 = vpop.permute.xlu0 %2234
        %v2236 = vlaneseq
        %v2237 = vshrl.u32 %v2236, 7
        %v2238 = vsub.s32 0, %v2237
        %v2239 = vrot.slane %v1609, %v2238
        %2241 = vbcast.lane.b32.xlu0 %v2239, 256
        %v2242 = vpop.permute.xlu0 %2241
        %s2244 = sor.u32 256, 8
        %2245 = vbcast.lane.b32.xlu0 %v2239, %s2244
        %v2246 = vpop.permute.xlu0 %2245
        %v2247 = vlaneseq
        %v2248 = vshrl.u32 %v2247, 7
        %v2249 = vsub.s32 1, %v2248
        %v2250 = vrot.slane %v1609, %v2249
        %2252 = vbcast.lane.b32.xlu0 %v2250, 256
        %v2253 = vpop.permute.xlu0 %2252
        %s2255 = sor.u32 256, 8
        %2256 = vbcast.lane.b32.xlu0 %v2250, %s2255
        %v2257 = vpop.permute.xlu0 %2256
        %v2258 = vlaneseq
        %v2259 = vshrl.u32 %v2258, 7
        %v2260 = vsub.s32 2, %v2259
        %v2261 = vrot.slane %v1609, %v2260
        %2263 = vbcast.lane.b32.xlu0 %v2261, 256
        %v2264 = vpop.permute.xlu0 %2263
        %s2266 = sor.u32 256, 8
        %2267 = vbcast.lane.b32.xlu0 %v2261, %s2266
        %v2268 = vpop.permute.xlu0 %2267
        %v2269 = vlaneseq
        %v2270 = vshrl.u32 %v2269, 7
        %v2271 = vsub.s32 3, %v2270
        %v2272 = vrot.slane %v1609, %v2271
        %2274 = vbcast.lane.b32.xlu0 %v2272, 256
        %v2275 = vpop.permute.xlu0 %2274
        %s2277 = sor.u32 256, 8
        %2278 = vbcast.lane.b32.xlu0 %v2272, %s2277
        %v2279 = vpop.permute.xlu0 %2278
        %v2280 = vlaneseq
        %v2281 = vshrl.u32 %v2280, 7
        %v2282 = vsub.s32 4, %v2281
        %v2283 = vrot.slane %v1609, %v2282
        %2285 = vbcast.lane.b32.xlu0 %v2283, 256
        %v2286 = vpop.permute.xlu0 %2285
        %s2288 = sor.u32 256, 8
        %2289 = vbcast.lane.b32.xlu0 %v2283, %s2288
        %v2290 = vpop.permute.xlu0 %2289
        %v2291 = vlaneseq
        %v2292 = vshrl.u32 %v2291, 7
        %v2293 = vsub.s32 5, %v2292
        %v2294 = vrot.slane %v1609, %v2293
        %2296 = vbcast.lane.b32.xlu0 %v2294, 256
        %v2297 = vpop.permute.xlu0 %2296
        %s2299 = sor.u32 256, 8
        %2300 = vbcast.lane.b32.xlu0 %v2294, %s2299
        %v2301 = vpop.permute.xlu0 %2300
        %v2302 = vlaneseq
        %v2303 = vshrl.u32 %v2302, 7
        %v2304 = vsub.s32 6, %v2303
        %v2305 = vrot.slane %v1609, %v2304
        %2307 = vbcast.lane.b32.xlu0 %v2305, 256
        %v2308 = vpop.permute.xlu0 %2307
        %s2310 = sor.u32 256, 8
        %2311 = vbcast.lane.b32.xlu0 %v2305, %s2310
        %v2312 = vpop.permute.xlu0 %2311
        %v2313 = vlaneseq
        %v2314 = vshrl.u32 %v2313, 7
        %v2315 = vsub.s32 7, %v2314
        %v2316 = vrot.slane %v1609, %v2315
        %2318 = vbcast.lane.b32.xlu0 %v2316, 256
        %v2319 = vpop.permute.xlu0 %2318
        %s2321 = sor.u32 256, 8
        %2322 = vbcast.lane.b32.xlu0 %v2316, %s2321
        %v2323 = vpop.permute.xlu0 %2322
        %v2326 = vcombine.high %v2145, %v2145
        %v2328 = vunpack.c.l.s4 1966171168
        %v2329 = vunpack.c.0.s8 %v2328
        %v2330 = vlaneseq
        %v2331 = vshrl.u32 %v2330, 7
        %v2332 = vsub.s32 %v2329, %v2331
        %v2333 = vrot.slane %v2145, %v2332
        %v2335 = vunpack.c.l.s4 1966171168
        %v2336 = vunpack.c.0.s8 %v2335
        %v2337 = vlaneseq
        %v2338 = vshrl.u32 %v2337, 7
        %v2339 = vsub.s32 %v2336, %v2338
        %v2340 = vrot.slane %v2326, %v2339
        %v2341 = vcombine.high %v2333, %v2333
        %v2342 = vcombine.high %v2340, %v2340
        %v2344 = vunpack.c.l.s4 1966171168
        %v2345 = vunpack.c.0.s8 %v2344
        %v2346 = vlaneseq
        %v2347 = vshrl.u32 %v2346, 7
        %v2348 = vsub.s32 %v2345, %v2347
        %v2349 = vrot.slane %v2333, %v2348
        %v2351 = vunpack.c.l.s4 1966171168
        %v2352 = vunpack.c.0.s8 %v2351
        %v2353 = vlaneseq
        %v2354 = vshrl.u32 %v2353, 7
        %v2355 = vsub.s32 %v2352, %v2354
        %v2356 = vrot.slane %v2340, %v2355
        %v2358 = vunpack.c.l.s4 1966171168
        %v2359 = vunpack.c.0.s8 %v2358
        %v2360 = vlaneseq
        %v2361 = vshrl.u32 %v2360, 7
        %v2362 = vsub.s32 %v2359, %v2361
        %v2363 = vrot.slane %v2341, %v2362
        %v2365 = vunpack.c.l.s4 1966171168
        %v2366 = vunpack.c.0.s8 %v2365
        %v2367 = vlaneseq
        %v2368 = vshrl.u32 %v2367, 7
        %v2369 = vsub.s32 %v2366, %v2368
        %v2370 = vrot.slane %v2342, %v2369
        %v2371 = vcombine.high %v2349, %v2349
        %v2372 = vcombine.high %v2356, %v2356
        %v2373 = vcombine.high %v2363, %v2363
        %v2374 = vcombine.high %v2370, %v2370
        %v2375 = vcombine.high %v2147, %v2147
        %v2377 = vunpack.c.l.s4 1966171168
        %v2378 = vunpack.c.0.s8 %v2377
        %v2379 = vlaneseq
        %v2380 = vshrl.u32 %v2379, 7
        %v2381 = vsub.s32 %v2378, %v2380
        %v2382 = vrot.slane %v2147, %v2381
        %v2384 = vunpack.c.l.s4 1966171168
        %v2385 = vunpack.c.0.s8 %v2384
        %v2386 = vlaneseq
        %v2387 = vshrl.u32 %v2386, 7
        %v2388 = vsub.s32 %v2385, %v2387
        %v2389 = vrot.slane %v2375, %v2388
        %v2390 = vcombine.high %v2382, %v2382
        %v2391 = vcombine.high %v2389, %v2389
        %v2393 = vunpack.c.l.s4 1966171168
        %v2394 = vunpack.c.0.s8 %v2393
        %v2395 = vlaneseq
        %v2396 = vshrl.u32 %v2395, 7
        %v2397 = vsub.s32 %v2394, %v2396
        %v2398 = vrot.slane %v2382, %v2397
        %v2400 = vunpack.c.l.s4 1966171168
        %v2401 = vunpack.c.0.s8 %v2400
        %v2402 = vlaneseq
        %v2403 = vshrl.u32 %v2402, 7
        %v2404 = vsub.s32 %v2401, %v2403
        %v2405 = vrot.slane %v2389, %v2404
        %v2407 = vunpack.c.l.s4 1966171168
        %v2408 = vunpack.c.0.s8 %v2407
        %v2409 = vlaneseq
        %v2410 = vshrl.u32 %v2409, 7
        %v2411 = vsub.s32 %v2408, %v2410
        %v2412 = vrot.slane %v2390, %v2411
        %v2414 = vunpack.c.l.s4 1966171168
        %v2415 = vunpack.c.0.s8 %v2414
        %v2416 = vlaneseq
        %v2417 = vshrl.u32 %v2416, 7
        %v2418 = vsub.s32 %v2415, %v2417
        %v2419 = vrot.slane %v2391, %v2418
        %v2420 = vcombine.high %v2398, %v2398
        %v2421 = vcombine.high %v2405, %v2405
        %v2422 = vcombine.high %v2412, %v2412
        %v2423 = vcombine.high %v2419, %v2419
        %v2424 = vlaneseq
        %v2425 = vshrl.u32 %v2424, 7
        %v2426 = vsub.s32 0, %v2425
        %v2427 = vrot.slane %v2349, %v2426
        %v2428 = vlaneseq
        %v2429 = vshrl.u32 %v2428, 7
        %v2430 = vsub.s32 0, %v2429
        %v2431 = vrot.slane %v2363, %v2430
        %v2432 = vlaneseq
        %v2433 = vshrl.u32 %v2432, 7
        %v2434 = vsub.s32 0, %v2433
        %v2435 = vrot.slane %v2371, %v2434
        %v2436 = vlaneseq
        %v2437 = vshrl.u32 %v2436, 7
        %v2438 = vsub.s32 0, %v2437
        %v2439 = vrot.slane %v2373, %v2438
        %v2440 = vlaneseq
        %v2441 = vshrl.u32 %v2440, 7
        %v2442 = vsub.s32 0, %v2441
        %v2443 = vrot.slane %v2356, %v2442
        %v2444 = vlaneseq
        %v2445 = vshrl.u32 %v2444, 7
        %v2446 = vsub.s32 0, %v2445
        %v2447 = vrot.slane %v2370, %v2446
        %v2448 = vlaneseq
        %v2449 = vshrl.u32 %v2448, 7
        %v2450 = vsub.s32 0, %v2449
        %v2451 = vrot.slane %v2372, %v2450
        %v2452 = vlaneseq
        %v2453 = vshrl.u32 %v2452, 7
        %v2454 = vsub.s32 0, %v2453
        %v2455 = vrot.slane %v2374, %v2454
        %v2456 = vlaneseq
        %v2457 = vshrl.u32 %v2456, 7
        %v2458 = vsub.s32 0, %v2457
        %v2459 = vrot.slane %v2398, %v2458
        %v2460 = vlaneseq
        %v2461 = vshrl.u32 %v2460, 7
        %v2462 = vsub.s32 0, %v2461
        %v2463 = vrot.slane %v2412, %v2462
        %v2464 = vlaneseq
        %v2465 = vshrl.u32 %v2464, 7
        %v2466 = vsub.s32 0, %v2465
        %v2467 = vrot.slane %v2420, %v2466
        %v2468 = vlaneseq
        %v2469 = vshrl.u32 %v2468, 7
        %v2470 = vsub.s32 0, %v2469
        %v2471 = vrot.slane %v2422, %v2470
        %v2472 = vlaneseq
        %v2473 = vshrl.u32 %v2472, 7
        %v2474 = vsub.s32 0, %v2473
        %v2475 = vrot.slane %v2405, %v2474
        %v2476 = vlaneseq
        %v2477 = vshrl.u32 %v2476, 7
        %v2478 = vsub.s32 0, %v2477
        %v2479 = vrot.slane %v2419, %v2478
        %v2480 = vlaneseq
        %v2481 = vshrl.u32 %v2480, 7
        %v2482 = vsub.s32 0, %v2481
        %v2483 = vrot.slane %v2421, %v2482
        %v2484 = vlaneseq
        %v2485 = vshrl.u32 %v2484, 7
        %v2486 = vsub.s32 0, %v2485
        %v2487 = vrot.slane %v2423, %v2486
        %v2504 = vmul.f32 %v2154, %v2427
        %v2505 = vmul.f32 %v2158, %v2427
        %v2506 = vmul.f32 %v2165, %v2431
        %v2507 = vmul.f32 %v2169, %v2431
        %v2508 = vmul.f32 %v2176, %v2435
        %v2509 = vmul.f32 %v2180, %v2435
        %v2510 = vmul.f32 %v2187, %v2439
        %v2511 = vmul.f32 %v2191, %v2439
        %v2512 = vmul.f32 %v2198, %v2443
        %v2513 = vmul.f32 %v2202, %v2443
        %v2514 = vmul.f32 %v2209, %v2447
        %v2515 = vmul.f32 %v2213, %v2447
        %v2516 = vmul.f32 %v2220, %v2451
        %v2517 = vmul.f32 %v2224, %v2451
        %v2518 = vmul.f32 %v2231, %v2455
        %v2519 = vmul.f32 %v2235, %v2455
        %v2520 = vmul.f32 %v2242, %v2459
        %v2521 = vmul.f32 %v2246, %v2459
        %v2522 = vmul.f32 %v2253, %v2463
        %v2523 = vmul.f32 %v2257, %v2463
        %v2524 = vmul.f32 %v2264, %v2467
        %v2525 = vmul.f32 %v2268, %v2467
        %v2526 = vmul.f32 %v2275, %v2471
        %v2527 = vmul.f32 %v2279, %v2471
        %v2528 = vmul.f32 %v2286, %v2475
        %v2529 = vmul.f32 %v2290, %v2475
        %v2530 = vmul.f32 %v2297, %v2479
        %v2531 = vmul.f32 %v2301, %v2479
        %v2532 = vmul.f32 %v2308, %v2483
        %v2533 = vmul.f32 %v2312, %v2483
        %v2534 = vmul.f32 %v2319, %v2487
        %v2535 = vmul.f32 %v2323, %v2487
        %v2536 = vadd.f32 %v814, %v2504
        %v2537 = vadd.f32 %v816, %v2505
        %v2538 = vadd.f32 %v814, %v2506
        %v2539 = vadd.f32 %v816, %v2507
        %v2540 = vadd.f32 %v814, %v2508
        %v2541 = vadd.f32 %v816, %v2509
        %v2542 = vadd.f32 %v814, %v2510
        %v2543 = vadd.f32 %v816, %v2511
        %v2544 = vadd.f32 %v814, %v2512
        %v2545 = vadd.f32 %v816, %v2513
        %v2546 = vadd.f32 %v814, %v2514
        %v2547 = vadd.f32 %v816, %v2515
        %v2548 = vadd.f32 %v814, %v2516
        %v2549 = vadd.f32 %v816, %v2517
        %v2550 = vadd.f32 %v814, %v2518
        %v2551 = vadd.f32 %v816, %v2519
        %v2552 = vadd.f32 %v814, %v2520
        %v2553 = vadd.f32 %v816, %v2521
        %v2554 = vadd.f32 %v814, %v2522
        %v2555 = vadd.f32 %v816, %v2523
        %v2556 = vadd.f32 %v814, %v2524
        %v2557 = vadd.f32 %v816, %v2525
        %v2558 = vadd.f32 %v814, %v2526
        %v2559 = vadd.f32 %v816, %v2527
        %v2560 = vadd.f32 %v814, %v2528
        %v2561 = vadd.f32 %v816, %v2529
        %v2562 = vadd.f32 %v814, %v2530
        %v2563 = vadd.f32 %v816, %v2531
        %v2564 = vadd.f32 %v814, %v2532
        %v2565 = vadd.f32 %v816, %v2533
        %v2566 = vadd.f32 %v814, %v2534
        %v2567 = vadd.f32 %v816, %v2535
        %2568 = vst.msk [vmem:[%s283] sm:$0xff] %vm316, %v2536
        %2569 = vst.msk [vmem:[%s283 + $0x8] sm:$0xff] %vm316, %v2537
        %2570 = vst.msk [vmem:[%s283 + $0x10] sm:$0xff] %vm316, %v2538
        %2571 = vst.msk [vmem:[%s283 + $0x18] sm:$0xff] %vm316, %v2539
        %2572 = vst.msk [vmem:[%s283 + $0x20] sm:$0xff] %vm316, %v2540
        %2573 = vst.msk [vmem:[%s283 + $0x28] sm:$0xff] %vm316, %v2541
        %2574 = vst.msk [vmem:[%s283 + $0x30] sm:$0xff] %vm316, %v2542
        %2575 = vst.msk [vmem:[%s283 + $0x38] sm:$0xff] %vm316, %v2543
        %2576 = vst.msk [vmem:[%s283 + $0x40] sm:$0xff] %vm316, %v2544
        %2577 = vst.msk [vmem:[%s283 + $0x48] sm:$0xff] %vm316, %v2545
        %2578 = vst.msk [vmem:[%s283 + $0x50] sm:$0xff] %vm316, %v2546
        %2579 = vst.msk [vmem:[%s283 + $0x58] sm:$0xff] %vm316, %v2547
        %2580 = vst.msk [vmem:[%s283 + $0x60] sm:$0xff] %vm316, %v2548
        %2581 = vst.msk [vmem:[%s283 + $0x68] sm:$0xff] %vm316, %v2549
        %2582 = vst.msk [vmem:[%s283 + $0x70] sm:$0xff] %vm316, %v2550
        %2583 = vst.msk [vmem:[%s283 + $0x78] sm:$0xff] %vm316, %v2551
        %2584 = vst.msk [vmem:[%s283 + $0x80] sm:$0xff] %vm316, %v2552
        %2585 = vst.msk [vmem:[%s283 + $0x88] sm:$0xff] %vm316, %v2553
        %2586 = vst.msk [vmem:[%s283 + $0x90] sm:$0xff] %vm316, %v2554
        %2587 = vst.msk [vmem:[%s283 + $0x98] sm:$0xff] %vm316, %v2555
        %2588 = vst.msk [vmem:[%s283 + $0xa0] sm:$0xff] %vm316, %v2556
        %2589 = vst.msk [vmem:[%s283 + $0xa8] sm:$0xff] %vm316, %v2557
        %2590 = vst.msk [vmem:[%s283 + $0xb0] sm:$0xff] %vm316, %v2558
        %2591 = vst.msk [vmem:[%s283 + $0xb8] sm:$0xff] %vm316, %v2559
        %2592 = vst.msk [vmem:[%s283 + $0xc0] sm:$0xff] %vm316, %v2560
        %2593 = vst.msk [vmem:[%s283 + $0xc8] sm:$0xff] %vm316, %v2561
        %2594 = vst.msk [vmem:[%s283 + $0xd0] sm:$0xff] %vm316, %v2562
        %2595 = vst.msk [vmem:[%s283 + $0xd8] sm:$0xff] %vm316, %v2563
        %2596 = vst.msk [vmem:[%s283 + $0xe0] sm:$0xff] %vm316, %v2564
        %2597 = vst.msk [vmem:[%s283 + $0xe8] sm:$0xff] %vm316, %v2565
        %2598 = vst.msk [vmem:[%s283 + $0xf0] sm:$0xff] %vm316, %v2566
        %2599 = vst.msk [vmem:[%s283 + $0xf8] sm:$0xff] %vm316, %v2567
        %s2600 = sand.u32 %s163, 1
        %s2601 = scalar_lea.sflag [#allocation4], %s2600
        %s2602 = sand.u32 %s163, 1
        %s2603 = smul.addr %s2602, 256
        %s2604 = scalar_lea.vmem [#allocation7], %s2603
        // Predicated region
        $region53: #{spatial_coord_attention.1} parent=43 // pred_check
          %p2605 = pneg %p173
        $region54: #{spatial_coord_attention.1} parent=43 // pred_check_branch
          %2607 = sbr.rel (%p2605) target = $region56
        $region55: #{spatial_coord_attention.1} parent=43 // pred_region
          %s2609 = ssub.s32 4096, 4096
          %2610 = vsyncadd %s2601, %s2609
          %s2611 = smul.addr %s24, 32
          %s2612 = smul.addr %s2611, 128
          %s2613 = scalar_lea.hbm %s6, %s2612
          %s2614 = sshll.u32 %s2604, 4
          %s2615 = int_to_ptr.vmem [resolvable:$true] %s2614
          %2620 = dma.vmem_to_hbm [thread:$0]  %s2615, 4096, %s2613, %s2601, 128, 128, 8
        $region56: #{spatial_coord_attention.1} parent=43 // pred_fallthru
          _
      $region44: #{spatial_coord_attention.1} parent=5 // pred_fallthru
        _
      %p2621 = scmp.le.s32.totalorder 2, %s19
      // Predicated region
      $region57: #{spatial_coord_attention.1} parent=5 // pred_check
        %p2622 = pneg %p2621
      $region58: #{spatial_coord_attention.1} parent=5 // pred_check_branch
        %2624 = sbr.rel (%p2622) target = $region60
      $region59: #{spatial_coord_attention.1} parent=5 // pred_region
        %s2625 = ssub.s32 %s19, 2
        // Predicated region
        $region61: #{spatial_coord_attention.1} parent=59 // pred_check
          %p2626 = pneg %p179
        $region62: #{spatial_coord_attention.1} parent=59 // pred_check_branch
          %2628 = sbr.rel (%p2626) target = $region64
        $region63: #{spatial_coord_attention.1} parent=59 // pred_region
          %s2629 = sand.u32 %s164, 1
          %s2630 = scalar_lea.sflag [#allocation4], %s2629
          %s2631 = sand.u32 %s164, 1
          %s2632 = smul.addr %s2631, 256
          %s2633 = scalar_lea.vmem [#allocation7], %s2632
          %2634 = dma.done %s2630, 4096
        $region64: #{spatial_coord_attention.1} parent=59 // pred_fallthru
          _
      $region60: #{spatial_coord_attention.1} parent=5 // pred_fallthru
        _
    $region6: #{spatial_coord_attention.1} parent=1 // loop_footer
      %s23 = sadd.s32 1, %s19
    $region7: #{spatial_coord_attention.1} parent=1 // loop_footer_branch
      %18 = sbr.rel target = $region3
    $region8: #{spatial_coord_attention.1} parent=1 // loop_exit
      _
    %2635 = vsyncpa [#allocation3], 1
    %s2636 = scalar_lea.sflag [#allocation3], 1
    %2637 = vsyncpa %s2636, 1
    %2638 = vsyncpa [#allocation4], 1
    %s2639 = scalar_lea.sflag [#allocation4], 1
    %2640 = vsyncpa %s2639, 1
    %2641 = vsyncpa [#allocation5], 1
    %s2642 = scalar_lea.sflag [#allocation5], 1
    %2643 = vsyncpa %s2642, 1

</llo_original>
